<compile_context>
chip_gen: v7x
topology: tpu7x:2x2x1
jax: 0.10.0
libtpu: 0.0.40
codegen_flags: <defaults>
</compile_context>

<pallas_src>
import functools

import jax
import jax.numpy as jnp
from jax.experimental import pallas as pl
from jax.experimental.pallas import tpu as pltpu

# Layer sizes of the encoder/decoder stack.
DIMS = [28 * 28, 128, 64, 12, 3, 12, 64, 128, 28 * 28]
NUM_LAYERS = len(DIMS) - 1                      # 8 Linear layers
RELU_LAYERS = (0, 1, 2, 4, 5, 6)                # ReLU after these; sigmoid after 7
# bf16 MXU operands only where the contraction dim is large enough to matter.
OPERAND_BF16 = tuple(DIMS[i] >= 128 for i in range(NUM_LAYERS))   # layers 0, 1, 7


def _round_up(n: int, m: int) -> int:
    return ((n + m - 1) // m) * m


def _cdiv(a: int, b: int) -> int:
    return (a + b - 1) // b


def _use_bf16_sigmoid() -> bool:
    """bf16 EUP sigmoid only where it helps (v6e / v7x); f32 elsewhere."""
    try:
        kind = jax.devices()[0].device_kind.lower()
    except Exception:
        return False
    return any(tag in kind for tag in ("v6", "v7", "7x"))


def autoencoder_kernel(sigmoid_bf16, x_ref, *refs):
    """refs = (w0, ..., w7, bias_ref, out_ref).

    x_ref:    (TB, 784) f32 batch tile (cast to bf16 here for the first matmul).
    wL:       (in, out); bf16 for layers 0/1/7, f32 for the tiny bottleneck layers.
    bias_ref: (8, 784)  f32, row L holds layer L's bias (zero padded).
    out_ref:  (TB, 784) f32.
    """
    out_ref = refs[-1]
    bias_ref = refs[-2]
    w_refs = refs[:-2]

    h = x_ref[...]                                     # f32 tile straight from HBM
    for layer in range(NUM_LAYERS):
        w = w_refs[layer][...]
        a = h.astype(w.dtype)                          # bf16 cast only for layers 0/1/7
        out_dim = DIMS[layer + 1]
        b = bias_ref[layer:layer + 1, :out_dim]        # (1, out_dim) f32
        h = jnp.dot(a, w, preferred_element_type=jnp.float32) + b
        if layer in RELU_LAYERS:
            h = jnp.maximum(h, 0.0)
    if sigmoid_bf16:
        h = h.astype(jnp.bfloat16)                     # bf16 EUP sigmoid on v6e/v7x
    out_ref[...] = jax.nn.sigmoid(h).astype(out_ref.dtype)


@functools.partial(jax.jit, static_argnames=("block_b", "sigmoid_bf16"))
def autoencoder_forward(x, weights, bias_pack, block_b: int = 1024,
                        sigmoid_bf16: bool = False):
    """x: (B, 784) f32. weights: tuple of 8 (in, out) arrays (pre-cast). bias_pack: (8, 784) f32."""
    B = x.shape[0]
    # Tile: multiple of 16 (bf16 sublane tile), sized so the grid has >=4 blocks
    # when the batch allows it (keeps both v7x TensorCores busy + pipelining).
    TB = min(block_b, max(16, _round_up(_cdiv(_round_up(B, 16), 4), 16)))
    B_pad = _round_up(B, TB)
    num_blocks = B_pad // TB

    if B_pad != B:
        x = jnp.pad(x, ((0, B_pad - B), (0, 0)))       # only when B % TB != 0

    in_specs = [pl.BlockSpec((TB, DIMS[0]), lambda i: (i, 0))]      # streamed x tile
    for w in weights:
        # Full-array block, constant index -> stays VMEM-resident across grid steps.
        in_specs.append(pl.BlockSpec(tuple(w.shape), lambda i: (0, 0)))
    in_specs.append(pl.BlockSpec(tuple(bias_pack.shape), lambda i: (0, 0)))
    out_spec = pl.BlockSpec((TB, DIMS[-1]), lambda i: (i, 0))

    out = pl.pallas_call(
        functools.partial(autoencoder_kernel, sigmoid_bf16),
        out_shape=jax.ShapeDtypeStruct((B_pad, DIMS[-1]), jnp.float32),
        grid=(num_blocks,),
        in_specs=in_specs,
        out_specs=out_spec,
        compiler_params=pltpu.CompilerParams(
            # Independent batch tiles -> shard grid across TensorCores (v7x megacore).
            dimension_semantics=("parallel",),
            # Fits TB=1024 double-buffered f32 x/out tiles; <= v7x's 64 MiB/core VMEM.
            vmem_limit_bytes=48 * 1024 * 1024,
        ),
    )(x, *weights, bias_pack)

    return out[:B] if B_pad != B else out


def init_params(key):
    """PyTorch-Linear-like uniform init; f32 master copies, W stored as (in, out)."""
    params = []
    for i in range(NUM_LAYERS):
        fan_in, fan_out = DIMS[i], DIMS[i + 1]
        key, kw, kb = jax.random.split(key, 3)
        bound = 1.0 / jnp.sqrt(jnp.float32(fan_in))
        w_t = jax.random.uniform(kw, (fan_in, fan_out), jnp.float32, -bound, bound)
        b = jax.random.uniform(kb, (1, fan_out), jnp.float32, -bound, bound)
        params.append((w_t, b))
    return params


def prepare_params(params):
    """One-time (outside jit) conversion: per-layer weight dtype + packed biases."""
    weights = []
    for layer, (w_t, _) in enumerate(params):
        dt = jnp.bfloat16 if OPERAND_BF16[layer] else jnp.float32
        weights.append(w_t.astype(dt))
    bias_pack = jnp.zeros((NUM_LAYERS, DIMS[-1]), jnp.float32)
    for layer, (_, b) in enumerate(params):
        bias_pack = bias_pack.at[layer, :DIMS[layer + 1]].set(
            b.reshape(-1).astype(jnp.float32))
    return tuple(weights), bias_pack


def reference_forward_mixed(x, params, sigmoid_bf16):
    """Pure-JAX reference mirroring the kernel's mixed bf16/f32 operand scheme."""
    h = x
    for layer, (w_t, b) in enumerate(params):
        dt = jnp.bfloat16 if OPERAND_BF16[layer] else jnp.float32
        h = jnp.dot(h.astype(dt), w_t.astype(dt),
                    preferred_element_type=jnp.float32) + b
        if layer in RELU_LAYERS:
            h = jnp.maximum(h, 0.0)
    if sigmoid_bf16:
        h = h.astype(jnp.bfloat16)
    return jax.nn.sigmoid(h).astype(jnp.float32)


def reference_forward_f32(x, params):
    """Full-precision reference (module semantics)."""
    h = x
    for layer, (w_t, b) in enumerate(params):
        h = h @ w_t + b
        if layer in RELU_LAYERS:
            h = jnp.maximum(h, 0.0)
    return jax.nn.sigmoid(h)


if __name__ == "__main__":
    key = jax.random.PRNGKey(0)
    key, kx = jax.random.split(key)

    B = 64                                              # small batch; gives a 4-block grid
    x = jax.random.uniform(kx, (B, 28 * 28), jnp.float32)
    params = init_params(key)
    weights, bias_pack = prepare_params(params)         # one-time cast, outside jit
    sigmoid_bf16 = _use_bf16_sigmoid()

    out = autoencoder_forward(x, weights, bias_pack, block_b=1024,
                              sigmoid_bf16=sigmoid_bf16)
    out = jax.block_until_ready(out)
    assert out.shape == (B, 28 * 28)

    # Tight check vs a reference that uses the same mixed-precision scheme.
    ref_mixed = reference_forward_mixed(x, params, sigmoid_bf16)
    assert jnp.allclose(out, ref_mixed, atol=1e-2, rtol=1e-2), "mismatch vs mixed reference"

    # Loose check vs the full-f32 module semantics (bf16 operand rounding only).
    ref_f32 = reference_forward_f32(x, params)
    assert jnp.allclose(out, ref_f32, atol=5e-2, rtol=5e-2), "mismatch vs f32 reference"

    print("KERNEL_OK")
</pallas_src>

<mosaic_0001>
module attributes {stable_mosaic.version = 11 : i64} {
  func.func @autoencoder_kernel(%arg0: i32, %arg1: memref<16x784xf32, #tpu.memory_space<vmem>>, %arg2: memref<784x128xbf16, #tpu.memory_space<vmem>>, %arg3: memref<128x64xbf16, #tpu.memory_space<vmem>>, %arg4: memref<64x12xf32, #tpu.memory_space<vmem>>, %arg5: memref<12x3xf32, #tpu.memory_space<vmem>>, %arg6: memref<3x12xf32, #tpu.memory_space<vmem>>, %arg7: memref<12x64xf32, #tpu.memory_space<vmem>>, %arg8: memref<64x128xf32, #tpu.memory_space<vmem>>, %arg9: memref<128x784xbf16, #tpu.memory_space<vmem>>, %arg10: memref<8x784xf32, #tpu.memory_space<vmem>>, %arg11: memref<16x784xf32, #tpu.memory_space<vmem>>) attributes {dimension_semantics = [#tpu.dimension_semantics<parallel>], iteration_bounds = array<i64: 4>, scalar_prefetch = 0 : i64, scratch_operands = 0 : i64, tpu.core_type = #tpu.core_type<tc>, window_params = [{transform_indices = @transform_0, window_bounds = array<i64: 16, 784>}, {pipeline_mode = #tpu.pipeline_mode<synchronous>, transform_indices = @transform_1, window_bounds = array<i64: 784, 128>}, {pipeline_mode = #tpu.pipeline_mode<synchronous>, transform_indices = @transform_2, window_bounds = array<i64: 128, 64>}, {pipeline_mode = #tpu.pipeline_mode<synchronous>, transform_indices = @transform_3, window_bounds = array<i64: 64, 12>}, {pipeline_mode = #tpu.pipeline_mode<synchronous>, transform_indices = @transform_4, window_bounds = array<i64: 12, 3>}, {pipeline_mode = #tpu.pipeline_mode<synchronous>, transform_indices = @transform_5, window_bounds = array<i64: 3, 12>}, {pipeline_mode = #tpu.pipeline_mode<synchronous>, transform_indices = @transform_6, window_bounds = array<i64: 12, 64>}, {pipeline_mode = #tpu.pipeline_mode<synchronous>, transform_indices = @transform_7, window_bounds = array<i64: 64, 128>}, {pipeline_mode = #tpu.pipeline_mode<synchronous>, transform_indices = @transform_8, window_bounds = array<i64: 128, 784>}, {pipeline_mode = #tpu.pipeline_mode<synchronous>, transform_indices = @transform_9, window_bounds = array<i64: 8, 784>}, {transform_indices = @transform_10, window_bounds = array<i64: 16, 784>}]} {
    %c0 = arith.constant 0 : index
    %c0_0 = arith.constant 0 : index
    %0 = vector.load %arg1[%c0, %c0_0] : memref<16x784xf32, #tpu.memory_space<vmem>>, vector<16x784xf32>
    %c0_1 = arith.constant 0 : index
    %c0_2 = arith.constant 0 : index
    %1 = vector.load %arg2[%c0_1, %c0_2] : memref<784x128xbf16, #tpu.memory_space<vmem>>, vector<784x128xbf16>
    %2 = arith.truncf %0 : vector<16x784xf32> to vector<16x784xbf16>
    %c0_3 = arith.constant 0 : index
    %c0_4 = arith.constant 0 : index
    %3 = vector.load %arg10[%c0_3, %c0_4] : memref<8x784xf32, #tpu.memory_space<vmem>>, vector<1x128xf32>
    %cst = arith.constant dense<0.000000e+00> : vector<16x128xf32>
    %4 = tpu.matmul %2, %1, %cst {dimension_numbers = #tpu.dot_dimension_numbers<[1], [0], [0], [1], [0, 0, 1, 1], [], []>} : vector<16x784xbf16>, vector<784x128xbf16>, vector<16x128xf32> -> vector<16x128xf32>
    %5 = vector.broadcast %3 : vector<1x128xf32> to vector<16x128xf32>
    %6 = arith.addf %4, %5 : vector<16x128xf32>
    %cst_5 = arith.constant 0.000000e+00 : f32
    %7 = vector.broadcast %cst_5 : f32 to vector<16x128xf32>
    %8 = arith.maximumf %6, %7 : vector<16x128xf32>
    %c0_6 = arith.constant 0 : index
    %c0_7 = arith.constant 0 : index
    %9 = vector.load %arg3[%c0_6, %c0_7] : memref<128x64xbf16, #tpu.memory_space<vmem>>, vector<128x64xbf16>
    %10 = arith.truncf %8 : vector<16x128xf32> to vector<16x128xbf16>
    %c1 = arith.constant 1 : index
    %c0_8 = arith.constant 0 : index
    %11 = vector.load %arg10[%c1, %c0_8] : memref<8x784xf32, #tpu.memory_space<vmem>>, vector<1x64xf32>
    %cst_9 = arith.constant dense<0.000000e+00> : vector<16x64xf32>
    %12 = tpu.matmul %10, %9, %cst_9 {dimension_numbers = #tpu.dot_dimension_numbers<[1], [0], [0], [1], [0, 0, 1, 1], [], []>} : vector<16x128xbf16>, vector<128x64xbf16>, vector<16x64xf32> -> vector<16x64xf32>
    %13 = vector.broadcast %11 : vector<1x64xf32> to vector<16x64xf32>
    %14 = arith.addf %12, %13 : vector<16x64xf32>
    %cst_10 = arith.constant 0.000000e+00 : f32
    %15 = vector.broadcast %cst_10 : f32 to vector<16x64xf32>
    %16 = arith.maximumf %14, %15 : vector<16x64xf32>
    %c0_11 = arith.constant 0 : index
    %c0_12 = arith.constant 0 : index
    %17 = vector.load %arg4[%c0_11, %c0_12] : memref<64x12xf32, #tpu.memory_space<vmem>>, vector<64x12xf32>
    %c2 = arith.constant 2 : index
    %c0_13 = arith.constant 0 : index
    %18 = vector.load %arg10[%c2, %c0_13] : memref<8x784xf32, #tpu.memory_space<vmem>>, vector<1x12xf32>
    %cst_14 = arith.constant dense<0.000000e+00> : vector<16x12xf32>
    %19 = tpu.matmul %16, %17, %cst_14 {dimension_numbers = #tpu.dot_dimension_numbers<[1], [0], [0], [1], [0, 0, 1, 1], [], []>} : vector<16x64xf32>, vector<64x12xf32>, vector<16x12xf32> -> vector<16x12xf32>
    %20 = vector.broadcast %18 : vector<1x12xf32> to vector<16x12xf32>
    %21 = arith.addf %19, %20 : vector<16x12xf32>
    %cst_15 = arith.constant 0.000000e+00 : f32
    %22 = vector.broadcast %cst_15 : f32 to vector<16x12xf32>
    %23 = arith.maximumf %21, %22 : vector<16x12xf32>
    %c0_16 = arith.constant 0 : index
    %c0_17 = arith.constant 0 : index
    %24 = vector.load %arg5[%c0_16, %c0_17] : memref<12x3xf32, #tpu.memory_space<vmem>>, vector<12x3xf32>
    %c3 = arith.constant 3 : index
    %c0_18 = arith.constant 0 : index
    %25 = vector.load %arg10[%c3, %c0_18] : memref<8x784xf32, #tpu.memory_space<vmem>>, vector<1x3xf32>
    %cst_19 = arith.constant dense<0.000000e+00> : vector<16x3xf32>
    %26 = tpu.matmul %23, %24, %cst_19 {dimension_numbers = #tpu.dot_dimension_numbers<[1], [0], [0], [1], [0, 0, 1, 1], [], []>} : vector<16x12xf32>, vector<12x3xf32>, vector<16x3xf32> -> vector<16x3xf32>
    %27 = vector.broadcast %25 : vector<1x3xf32> to vector<16x3xf32>
    %28 = arith.addf %26, %27 : vector<16x3xf32>
    %c0_20 = arith.constant 0 : index
    %c0_21 = arith.constant 0 : index
    %29 = vector.load %arg6[%c0_20, %c0_21] : memref<3x12xf32, #tpu.memory_space<vmem>>, vector<3x12xf32>
    %c4 = arith.constant 4 : index
    %c0_22 = arith.constant 0 : index
    %30 = vector.load %arg10[%c4, %c0_22] : memref<8x784xf32, #tpu.memory_space<vmem>>, vector<1x12xf32>
    %cst_23 = arith.constant dense<0.000000e+00> : vector<16x12xf32>
    %31 = tpu.matmul %28, %29, %cst_23 {dimension_numbers = #tpu.dot_dimension_numbers<[1], [0], [0], [1], [0, 0, 1, 1], [], []>} : vector<16x3xf32>, vector<3x12xf32>, vector<16x12xf32> -> vector<16x12xf32>
    %32 = vector.broadcast %30 : vector<1x12xf32> to vector<16x12xf32>
    %33 = arith.addf %31, %32 : vector<16x12xf32>
    %cst_24 = arith.constant 0.000000e+00 : f32
    %34 = vector.broadcast %cst_24 : f32 to vector<16x12xf32>
    %35 = arith.maximumf %33, %34 : vector<16x12xf32>
    %c0_25 = arith.constant 0 : index
    %c0_26 = arith.constant 0 : index
    %36 = vector.load %arg7[%c0_25, %c0_26] : memref<12x64xf32, #tpu.memory_space<vmem>>, vector<12x64xf32>
    %c5 = arith.constant 5 : index
    %c0_27 = arith.constant 0 : index
    %37 = vector.load %arg10[%c5, %c0_27] : memref<8x784xf32, #tpu.memory_space<vmem>>, vector<1x64xf32>
    %cst_28 = arith.constant dense<0.000000e+00> : vector<16x64xf32>
    %38 = tpu.matmul %35, %36, %cst_28 {dimension_numbers = #tpu.dot_dimension_numbers<[1], [0], [0], [1], [0, 0, 1, 1], [], []>} : vector<16x12xf32>, vector<12x64xf32>, vector<16x64xf32> -> vector<16x64xf32>
    %39 = vector.broadcast %37 : vector<1x64xf32> to vector<16x64xf32>
    %40 = arith.addf %38, %39 : vector<16x64xf32>
    %cst_29 = arith.constant 0.000000e+00 : f32
    %41 = vector.broadcast %cst_29 : f32 to vector<16x64xf32>
    %42 = arith.maximumf %40, %41 : vector<16x64xf32>
    %c0_30 = arith.constant 0 : index
    %c0_31 = arith.constant 0 : index
    %43 = vector.load %arg8[%c0_30, %c0_31] : memref<64x128xf32, #tpu.memory_space<vmem>>, vector<64x128xf32>
    %c6 = arith.constant 6 : index
    %c0_32 = arith.constant 0 : index
    %44 = vector.load %arg10[%c6, %c0_32] : memref<8x784xf32, #tpu.memory_space<vmem>>, vector<1x128xf32>
    %cst_33 = arith.constant dense<0.000000e+00> : vector<16x128xf32>
    %45 = tpu.matmul %42, %43, %cst_33 {dimension_numbers = #tpu.dot_dimension_numbers<[1], [0], [0], [1], [0, 0, 1, 1], [], []>} : vector<16x64xf32>, vector<64x128xf32>, vector<16x128xf32> -> vector<16x128xf32>
    %46 = vector.broadcast %44 : vector<1x128xf32> to vector<16x128xf32>
    %47 = arith.addf %45, %46 : vector<16x128xf32>
    %cst_34 = arith.constant 0.000000e+00 : f32
    %48 = vector.broadcast %cst_34 : f32 to vector<16x128xf32>
    %49 = arith.maximumf %47, %48 : vector<16x128xf32>
    %c0_35 = arith.constant 0 : index
    %c0_36 = arith.constant 0 : index
    %50 = vector.load %arg9[%c0_35, %c0_36] : memref<128x784xbf16, #tpu.memory_space<vmem>>, vector<128x784xbf16>
    %51 = arith.truncf %49 : vector<16x128xf32> to vector<16x128xbf16>
    %c7 = arith.constant 7 : index
    %c0_37 = arith.constant 0 : index
    %52 = vector.load %arg10[%c7, %c0_37] : memref<8x784xf32, #tpu.memory_space<vmem>>, vector<1x784xf32>
    %cst_38 = arith.constant dense<0.000000e+00> : vector<16x784xf32>
    %53 = tpu.matmul %51, %50, %cst_38 {dimension_numbers = #tpu.dot_dimension_numbers<[1], [0], [0], [1], [0, 0, 1, 1], [], []>} : vector<16x128xbf16>, vector<128x784xbf16>, vector<16x784xf32> -> vector<16x784xf32>
    %54 = vector.broadcast %52 : vector<1x784xf32> to vector<16x784xf32>
    %55 = arith.addf %53, %54 : vector<16x784xf32>
    %56 = arith.negf %55 : vector<16x784xf32>
    %57 = math.exp %56 : vector<16x784xf32>
    %cst_39 = arith.constant 1.000000e+00 : f32
    %58 = vector.broadcast %cst_39 : f32 to vector<16x784xf32>
    %59 = arith.addf %58, %57 : vector<16x784xf32>
    %60 = arith.divf %58, %59 : vector<16x784xf32>
    %c0_40 = arith.constant 0 : index
    %c0_41 = arith.constant 0 : index
    %61 = vector.load %arg11[%c0_40, %c0_41] : memref<16x784xf32, #tpu.memory_space<vmem>>, vector<16x784xf32>
    tpu.vector_store %arg11[%c0_40, %c0_41], %60 {strides = array<i32>} : memref<16x784xf32, #tpu.memory_space<vmem>>, vector<16x784xf32>,
    return
  }
  func.func @transform_0(%arg0: i32) -> (i32, i32) {
    %c0_i32 = arith.constant 0 : i32
    %c0_i32_0 = arith.constant 0 : i32
    return %arg0, %c0_i32 : i32, i32
  }
  func.func @transform_1(%arg0: i32) -> (i32, i32) {
    %c0_i32 = arith.constant 0 : i32
    %c0_i32_0 = arith.constant 0 : i32
    %c0_i32_1 = arith.constant 0 : i32
    return %c0_i32, %c0_i32_0 : i32, i32
  }
  func.func @transform_2(%arg0: i32) -> (i32, i32) {
    %c0_i32 = arith.constant 0 : i32
    %c0_i32_0 = arith.constant 0 : i32
    %c0_i32_1 = arith.constant 0 : i32
    return %c0_i32, %c0_i32_0 : i32, i32
  }
  func.func @transform_3(%arg0: i32) -> (i32, i32) {
    %c0_i32 = arith.constant 0 : i32
    %c0_i32_0 = arith.constant 0 : i32
    %c0_i32_1 = arith.constant 0 : i32
    return %c0_i32, %c0_i32_0 : i32, i32
  }
  func.func @transform_4(%arg0: i32) -> (i32, i32) {
    %c0_i32 = arith.constant 0 : i32
    %c0_i32_0 = arith.constant 0 : i32
    %c0_i32_1 = arith.constant 0 : i32
    return %c0_i32, %c0_i32_0 : i32, i32
  }
  func.func @transform_5(%arg0: i32) -> (i32, i32) {
    %c0_i32 = arith.constant 0 : i32
    %c0_i32_0 = arith.constant 0 : i32
    %c0_i32_1 = arith.constant 0 : i32
    return %c0_i32, %c0_i32_0 : i32, i32
  }
  func.func @transform_6(%arg0: i32) -> (i32, i32) {
    %c0_i32 = arith.constant 0 : i32
    %c0_i32_0 = arith.constant 0 : i32
    %c0_i32_1 = arith.constant 0 : i32
    return %c0_i32, %c0_i32_0 : i32, i32
  }
  func.func @transform_7(%arg0: i32) -> (i32, i32) {
    %c0_i32 = arith.constant 0 : i32
    %c0_i32_0 = arith.constant 0 : i32
    %c0_i32_1 = arith.constant 0 : i32
    return %c0_i32, %c0_i32_0 : i32, i32
  }
  func.func @transform_8(%arg0: i32) -> (i32, i32) {
    %c0_i32 = arith.constant 0 : i32
    %c0_i32_0 = arith.constant 0 : i32
    %c0_i32_1 = arith.constant 0 : i32
    return %c0_i32, %c0_i32_0 : i32, i32
  }
  func.func @transform_9(%arg0: i32) -> (i32, i32) {
    %c0_i32 = arith.constant 0 : i32
    %c0_i32_0 = arith.constant 0 : i32
    %c0_i32_1 = arith.constant 0 : i32
    return %c0_i32, %c0_i32_0 : i32, i32
  }
  func.func @transform_10(%arg0: i32) -> (i32, i32) {
    %c0_i32 = arith.constant 0 : i32
    %c0_i32_0 = arith.constant 0 : i32
    return %arg0, %c0_i32 : i32, i32
  }
}

</mosaic_0001>

<llo_original>
// kernel: autoencoder_forward.1
$region0: #{autoencoder_forward.1}
  #allocation0 [shape = 'u32[]', space=smem, size = 0x4, offset = 0x4, fixed_abs, tag = 'smem constant byte address 0x4 - core index']
  #allocation1 [shape = 'u32[144,128]{1,0:T(1,128)}', space=vmem, size = 0x12000, scoped, tag = 'internal scratch']
  %s0 = inlined_call_operand.vmem [shape: f32[64,784], index: 0, kind: input, shape index: {}]
  %s1 = inlined_call_operand.vmem [shape: bf16[784,128], index: 1, kind: input, shape index: {}]
  %s2 = inlined_call_operand.vmem [shape: bf16[128,64], index: 2, kind: input, shape index: {}]
  %s3 = inlined_call_operand.vmem [shape: f32[64,12], index: 3, kind: input, shape index: {}]
  %s4 = inlined_call_operand.vmem [shape: f32[12,3], index: 4, kind: input, shape index: {}]
  %s5 = inlined_call_operand.vmem [shape: f32[3,12], index: 5, kind: input, shape index: {}]
  %s6 = inlined_call_operand.vmem [shape: f32[12,64], index: 6, kind: input, shape index: {}]
  %s7 = inlined_call_operand.vmem [shape: f32[64,128], index: 7, kind: input, shape index: {}]
  %s8 = inlined_call_operand.vmem [shape: bf16[128,784], index: 8, kind: input, shape index: {}]
  %s9 = inlined_call_operand.vmem [shape: f32[8,784], index: 9, kind: input, shape index: {}]
  %s10 = inlined_call_operand.hbm [shape: f32[64,784], index: 10, kind: output, shape index: {}]
  %s11 = sld [smem:[#allocation0]]
  $region73: #{autoencoder_forward.1} parent=0
    _
  %s13 = ssub.s32 1, %s11
  %s14 = scalar_select 0, %s13, %s11
  $region1: #{autoencoder_forward.1} parent=0
    #allocation2 [shape = 'u8[114688]{0}', space=vmem, size = 0x1c000, scoped, tag = 'output window, operand 0']
    #allocation3 [shape = 's32[2]{0}', space=sflag, size = 0x8, scoped, tag = 'scoped memory for autoencoder_forward.1']
    %15 = vsyncpa [#allocation3], 0
    %s16 = scalar_lea.sflag [#allocation3], 1
    %17 = vsyncpa %s16, 0
    loop: start=0, step=1, limit=6
    $region2: #{autoencoder_forward.1} parent=1 // loop_pre_header
      _
    $region3: #{autoencoder_forward.1} parent=1 // loop_header
      %s19 = sphi 0, %s23
      %p20 = scmp.ge.s32.totalorder %s19, 6
      %s29 = sphi 0, %s31
      %s32 = sphi 0, %s29
      %s33 = sphi 0, %s32
      %s49 = sphi 0, %s33
      %s53 = sphi 0, %s53
      %s55 = sphi 0, %s53
      %s56 = sphi 0, %s55
      %s70 = sphi 0, %s56
      %s74 = sphi 0, %s74
      %s76 = sphi 0, %s74
      %s77 = sphi 0, %s76
      %s91 = sphi 0, %s77
      %s95 = sphi 0, %s95
      %s97 = sphi 0, %s95
      %s98 = sphi 0, %s97
      %s112 = sphi 0, %s98
      %s116 = sphi 0, %s116
      %s118 = sphi 0, %s116
      %s119 = sphi 0, %s118
      %s133 = sphi 0, %s119
      %s137 = sphi 0, %s137
      %s139 = sphi 0, %s137
      %s140 = sphi 0, %s139
      %s154 = sphi 0, %s140
      %s158 = sphi 0, %s158
      %s160 = sphi 0, %s158
      %s161 = sphi 0, %s160
      %s175 = sphi 0, %s161
      %s179 = sphi 0, %s179
      %s181 = sphi 0, %s179
      %s182 = sphi 0, %s181
      %s196 = sphi 0, %s182
      %s200 = sphi 0, %s200
      %s202 = sphi 0, %s200
      %s203 = sphi 0, %s202
      %s217 = sphi 0, %s203
      %s221 = sphi 0, %s221
      %s223 = sphi 0, %s221
      %s224 = sphi 0, %s223
      %s238 = sphi 0, %s224
      %s244 = sphi 0, %s246
      %s247 = sphi 0, %s244
      %s248 = sphi 0, %s247
      %s264 = sphi 0, %s248
    $region4: #{autoencoder_forward.1} parent=1 // loop_header_branch
      %22 = sbr.rel (%p20) target = $region8
    $region5: #{autoencoder_forward.1} parent=1 // loop_body
      %s24 = ssub.s32 %s19, 1
      %s25 = ssub.s32 %s19, 2
      %s26 = sadd.s32 %s19, 1
      %s27 = ssub.s32 %s19, %s26
      %p28 = scmp.eq.s32.totalorder %s27, 0
      %s30 = sadd.s32 %s29, 1
      %s31 = scalar_select %p28, %s29, %s30
      %p34 = pneg %p28
      %p35 = scmp.eq.s32.totalorder %s19, 3
      %p36 = por %p34, %p35
      %p37 = scmp.ne.s32.totalorder %s29, %s32
      %p38 = scmp.eq.s32.totalorder %s19, 0
      %p39 = por %p37, %p38
      %p40 = scmp.ne.s32.totalorder %s29, %s32
      %p41 = scmp.eq.s32.totalorder %s24, 3
      %p42 = por %p40, %p41
      %p43 = scmp.ne.s32.totalorder %s32, %s33
      %p44 = scmp.eq.s32.totalorder %s24, 0
      %p45 = por %p43, %p44
      %p46 = scmp.ne.s32.totalorder %s32, %s33
      %p47 = scmp.eq.s32.totalorder %s25, 3
      %p48 = por %p46, %p47
      %p50 = scmp.ne.s32.totalorder %s33, %s49
      %p51 = scmp.eq.s32.totalorder %s25, 0
      %p52 = por %p50, %p51
      %s54 = sadd.s32 %s53, 1
      %p57 = scmp.eq.s32.totalorder %s19, 3
      %p58 = scmp.ne.s32.totalorder %s53, %s55
      %p59 = scmp.eq.s32.totalorder %s19, 0
      %p60 = por %p58, %p59
      %p61 = scmp.ne.s32.totalorder %s53, %s55
      %p62 = scmp.eq.s32.totalorder %s24, 3
      %p63 = por %p61, %p62
      %p64 = scmp.ne.s32.totalorder %s55, %s56
      %p65 = scmp.eq.s32.totalorder %s24, 0
      %p66 = por %p64, %p65
      %p67 = scmp.ne.s32.totalorder %s55, %s56
      %p68 = scmp.eq.s32.totalorder %s25, 3
      %p69 = por %p67, %p68
      %p71 = scmp.ne.s32.totalorder %s56, %s70
      %p72 = scmp.eq.s32.totalorder %s25, 0
      %p73 = por %p71, %p72
      %s75 = sadd.s32 %s74, 1
      %p78 = scmp.eq.s32.totalorder %s19, 3
      %p79 = scmp.ne.s32.totalorder %s74, %s76
      %p80 = scmp.eq.s32.totalorder %s19, 0
      %p81 = por %p79, %p80
      %p82 = scmp.ne.s32.totalorder %s74, %s76
      %p83 = scmp.eq.s32.totalorder %s24, 3
      %p84 = por %p82, %p83
      %p85 = scmp.ne.s32.totalorder %s76, %s77
      %p86 = scmp.eq.s32.totalorder %s24, 0
      %p87 = por %p85, %p86
      %p88 = scmp.ne.s32.totalorder %s76, %s77
      %p89 = scmp.eq.s32.totalorder %s25, 3
      %p90 = por %p88, %p89
      %p92 = scmp.ne.s32.totalorder %s77, %s91
      %p93 = scmp.eq.s32.totalorder %s25, 0
      %p94 = por %p92, %p93
      %s96 = sadd.s32 %s95, 1
      %p99 = scmp.eq.s32.totalorder %s19, 3
      %p100 = scmp.ne.s32.totalorder %s95, %s97
      %p101 = scmp.eq.s32.totalorder %s19, 0
      %p102 = por %p100, %p101
      %p103 = scmp.ne.s32.totalorder %s95, %s97
      %p104 = scmp.eq.s32.totalorder %s24, 3
      %p105 = por %p103, %p104
      %p106 = scmp.ne.s32.totalorder %s97, %s98
      %p107 = scmp.eq.s32.totalorder %s24, 0
      %p108 = por %p106, %p107
      %p109 = scmp.ne.s32.totalorder %s97, %s98
      %p110 = scmp.eq.s32.totalorder %s25, 3
      %p111 = por %p109, %p110
      %p113 = scmp.ne.s32.totalorder %s98, %s112
      %p114 = scmp.eq.s32.totalorder %s25, 0
      %p115 = por %p113, %p114
      %s117 = sadd.s32 %s116, 1
      %p120 = scmp.eq.s32.totalorder %s19, 3
      %p121 = scmp.ne.s32.totalorder %s116, %s118
      %p122 = scmp.eq.s32.totalorder %s19, 0
      %p123 = por %p121, %p122
      %p124 = scmp.ne.s32.totalorder %s116, %s118
      %p125 = scmp.eq.s32.totalorder %s24, 3
      %p126 = por %p124, %p125
      %p127 = scmp.ne.s32.totalorder %s118, %s119
      %p128 = scmp.eq.s32.totalorder %s24, 0
      %p129 = por %p127, %p128
      %p130 = scmp.ne.s32.totalorder %s118, %s119
      %p131 = scmp.eq.s32.totalorder %s25, 3
      %p132 = por %p130, %p131
      %p134 = scmp.ne.s32.totalorder %s119, %s133
      %p135 = scmp.eq.s32.totalorder %s25, 0
      %p136 = por %p134, %p135
      %s138 = sadd.s32 %s137, 1
      %p141 = scmp.eq.s32.totalorder %s19, 3
      %p142 = scmp.ne.s32.totalorder %s137, %s139
      %p143 = scmp.eq.s32.totalorder %s19, 0
      %p144 = por %p142, %p143
      %p145 = scmp.ne.s32.totalorder %s137, %s139
      %p146 = scmp.eq.s32.totalorder %s24, 3
      %p147 = por %p145, %p146
      %p148 = scmp.ne.s32.totalorder %s139, %s140
      %p149 = scmp.eq.s32.totalorder %s24, 0
      %p150 = por %p148, %p149
      %p151 = scmp.ne.s32.totalorder %s139, %s140
      %p152 = scmp.eq.s32.totalorder %s25, 3
      %p153 = por %p151, %p152
      %p155 = scmp.ne.s32.totalorder %s140, %s154
      %p156 = scmp.eq.s32.totalorder %s25, 0
      %p157 = por %p155, %p156
      %s159 = sadd.s32 %s158, 1
      %p162 = scmp.eq.s32.totalorder %s19, 3
      %p163 = scmp.ne.s32.totalorder %s158, %s160
      %p164 = scmp.eq.s32.totalorder %s19, 0
      %p165 = por %p163, %p164
      %p166 = scmp.ne.s32.totalorder %s158, %s160
      %p167 = scmp.eq.s32.totalorder %s24, 3
      %p168 = por %p166, %p167
      %p169 = scmp.ne.s32.totalorder %s160, %s161
      %p170 = scmp.eq.s32.totalorder %s24, 0
      %p171 = por %p169, %p170
      %p172 = scmp.ne.s32.totalorder %s160, %s161
      %p173 = scmp.eq.s32.totalorder %s25, 3
      %p174 = por %p172, %p173
      %p176 = scmp.ne.s32.totalorder %s161, %s175
      %p177 = scmp.eq.s32.totalorder %s25, 0
      %p178 = por %p176, %p177
      %s180 = sadd.s32 %s179, 1
      %p183 = scmp.eq.s32.totalorder %s19, 3
      %p184 = scmp.ne.s32.totalorder %s179, %s181
      %p185 = scmp.eq.s32.totalorder %s19, 0
      %p186 = por %p184, %p185
      %p187 = scmp.ne.s32.totalorder %s179, %s181
      %p188 = scmp.eq.s32.totalorder %s24, 3
      %p189 = por %p187, %p188
      %p190 = scmp.ne.s32.totalorder %s181, %s182
      %p191 = scmp.eq.s32.totalorder %s24, 0
      %p192 = por %p190, %p191
      %p193 = scmp.ne.s32.totalorder %s181, %s182
      %p194 = scmp.eq.s32.totalorder %s25, 3
      %p195 = por %p193, %p194
      %p197 = scmp.ne.s32.totalorder %s182, %s196
      %p198 = scmp.eq.s32.totalorder %s25, 0
      %p199 = por %p197, %p198
      %s201 = sadd.s32 %s200, 1
      %p204 = scmp.eq.s32.totalorder %s19, 3
      %p205 = scmp.ne.s32.totalorder %s200, %s202
      %p206 = scmp.eq.s32.totalorder %s19, 0
      %p207 = por %p205, %p206
      %p208 = scmp.ne.s32.totalorder %s200, %s202
      %p209 = scmp.eq.s32.totalorder %s24, 3
      %p210 = por %p208, %p209
      %p211 = scmp.ne.s32.totalorder %s202, %s203
      %p212 = scmp.eq.s32.totalorder %s24, 0
      %p213 = por %p211, %p212
      %p214 = scmp.ne.s32.totalorder %s202, %s203
      %p215 = scmp.eq.s32.totalorder %s25, 3
      %p216 = por %p214, %p215
      %p218 = scmp.ne.s32.totalorder %s203, %s217
      %p219 = scmp.eq.s32.totalorder %s25, 0
      %p220 = por %p218, %p219
      %s222 = sadd.s32 %s221, 1
      %p225 = scmp.eq.s32.totalorder %s19, 3
      %p226 = scmp.ne.s32.totalorder %s221, %s223
      %p227 = scmp.eq.s32.totalorder %s19, 0
      %p228 = por %p226, %p227
      %p229 = scmp.ne.s32.totalorder %s221, %s223
      %p230 = scmp.eq.s32.totalorder %s24, 3
      %p231 = por %p229, %p230
      %p232 = scmp.ne.s32.totalorder %s223, %s224
      %p233 = scmp.eq.s32.totalorder %s24, 0
      %p234 = por %p232, %p233
      %p235 = scmp.ne.s32.totalorder %s223, %s224
      %p236 = scmp.eq.s32.totalorder %s25, 3
      %p237 = por %p235, %p236
      %p239 = scmp.ne.s32.totalorder %s224, %s238
      %p240 = scmp.eq.s32.totalorder %s25, 0
      %p241 = por %p239, %p240
      %s242 = ssub.s32 %s19, %s26
      %p243 = scmp.eq.s32.totalorder %s242, 0
      %s245 = sadd.s32 %s244, 1
      %s246 = scalar_select %p243, %s244, %s245
      %p249 = pneg %p243
      %p250 = scmp.eq.s32.totalorder %s19, 3
      %p251 = por %p249, %p250
      %p252 = scmp.ne.s32.totalorder %s244, %s247
      %p253 = scmp.eq.s32.totalorder %s19, 0
      %p254 = por %p252, %p253
      %p255 = scmp.ne.s32.totalorder %s244, %s247
      %p256 = scmp.eq.s32.totalorder %s24, 3
      %p257 = por %p255, %p256
      %p258 = scmp.ne.s32.totalorder %s247, %s248
      %p259 = scmp.eq.s32.totalorder %s24, 0
      %p260 = por %p258, %p259
      %p261 = scmp.ne.s32.totalorder %s247, %s248
      %p262 = scmp.eq.s32.totalorder %s25, 3
      %p263 = por %p261, %p262
      %p265 = scmp.ne.s32.totalorder %s248, %s264
      %p266 = scmp.eq.s32.totalorder %s25, 0
      %p267 = por %p265, %p266
      %p268 = scmp.le.s32.totalorder 1, %s19
      %p269 = scmp.lt.s32.totalorder %s19, 5
      %p270 = pnand %p268, %p269
      %p271 = pneg %p270
      // Predicated region
      $region9: #{autoencoder_forward.1} parent=5 // pred_check
        _
      $region10: #{autoencoder_forward.1} parent=5 // pred_check_branch
        %273 = sbr.rel (%p270) target = $region12
      $region11: #{autoencoder_forward.1} parent=5 // pred_region
        %s274 = ssub.s32 %s19, 1
        // Predicated region
        $region13: #{autoencoder_forward.1} parent=11 // pred_check
          %p275 = pneg %p66
        $region14: #{autoencoder_forward.1} parent=11 // pred_check_branch
          %277 = sbr.rel (%p275) target = $region16
        $region15: #{autoencoder_forward.1} parent=11 // pred_region
          _
        $region16: #{autoencoder_forward.1} parent=11 // pred_fallthru
          _
        // Predicated region
        $region17: #{autoencoder_forward.1} parent=11 // pred_check
          %p278 = pneg %p87
        $region18: #{autoencoder_forward.1} parent=11 // pred_check_branch
          %280 = sbr.rel (%p278) target = $region20
        $region19: #{autoencoder_forward.1} parent=11 // pred_region
          _
        $region20: #{autoencoder_forward.1} parent=11 // pred_fallthru
          _
        // Predicated region
        $region21: #{autoencoder_forward.1} parent=11 // pred_check
          %p281 = pneg %p108
        $region22: #{autoencoder_forward.1} parent=11 // pred_check_branch
          %283 = sbr.rel (%p281) target = $region24
        $region23: #{autoencoder_forward.1} parent=11 // pred_region
          _
        $region24: #{autoencoder_forward.1} parent=11 // pred_fallthru
          _
        // Predicated region
        $region25: #{autoencoder_forward.1} parent=11 // pred_check
          %p284 = pneg %p129
        $region26: #{autoencoder_forward.1} parent=11 // pred_check_branch
          %286 = sbr.rel (%p284) target = $region28
        $region27: #{autoencoder_forward.1} parent=11 // pred_region
          _
        $region28: #{autoencoder_forward.1} parent=11 // pred_fallthru
          _
        // Predicated region
        $region29: #{autoencoder_forward.1} parent=11 // pred_check
          %p287 = pneg %p150
        $region30: #{autoencoder_forward.1} parent=11 // pred_check_branch
          %289 = sbr.rel (%p287) target = $region32
        $region31: #{autoencoder_forward.1} parent=11 // pred_region
          _
        $region32: #{autoencoder_forward.1} parent=11 // pred_fallthru
          _
        // Predicated region
        $region33: #{autoencoder_forward.1} parent=11 // pred_check
          %p290 = pneg %p171
        $region34: #{autoencoder_forward.1} parent=11 // pred_check_branch
          %292 = sbr.rel (%p290) target = $region36
        $region35: #{autoencoder_forward.1} parent=11 // pred_region
          _
        $region36: #{autoencoder_forward.1} parent=11 // pred_fallthru
          _
        // Predicated region
        $region37: #{autoencoder_forward.1} parent=11 // pred_check
          %p293 = pneg %p192
        $region38: #{autoencoder_forward.1} parent=11 // pred_check_branch
          %295 = sbr.rel (%p293) target = $region40
        $region39: #{autoencoder_forward.1} parent=11 // pred_region
          _
        $region40: #{autoencoder_forward.1} parent=11 // pred_fallthru
          _
        // Predicated region
        $region41: #{autoencoder_forward.1} parent=11 // pred_check
          %p296 = pneg %p213
        $region42: #{autoencoder_forward.1} parent=11 // pred_check_branch
          %298 = sbr.rel (%p296) target = $region44
        $region43: #{autoencoder_forward.1} parent=11 // pred_region
          _
        $region44: #{autoencoder_forward.1} parent=11 // pred_fallthru
          _
        // Predicated region
        $region45: #{autoencoder_forward.1} parent=11 // pred_check
          %p299 = pneg %p234
        $region46: #{autoencoder_forward.1} parent=11 // pred_check_branch
          %301 = sbr.rel (%p299) target = $region48
        $region47: #{autoencoder_forward.1} parent=11 // pred_region
          _
        $region48: #{autoencoder_forward.1} parent=11 // pred_fallthru
          _
      $region12: #{autoencoder_forward.1} parent=5 // pred_fallthru
        _
      %p302 = scmp.lt.s32.totalorder %s19, 4
      // Predicated region
      $region49: #{autoencoder_forward.1} parent=5 // pred_check
        %p303 = pneg %p302
      $region50: #{autoencoder_forward.1} parent=5 // pred_check_branch
        %305 = sbr.rel (%p303) target = $region52
      $region51: #{autoencoder_forward.1} parent=5 // pred_region
        // Predicated region
        $region53: #{autoencoder_forward.1} parent=51 // pred_check
          %p306 = pneg %p39
        $region54: #{autoencoder_forward.1} parent=51 // pred_check_branch
          %308 = sbr.rel (%p306) target = $region56
        $region55: #{autoencoder_forward.1} parent=51 // pred_region
          %s309 = smul.u32 2, %s19
          %p310 = scmp.lt.s32.totalorder %s309, 7
          %s311 = scalar_select %p310, %s309, 7
          %s312 = smul.addr %s311, 7
          %s313 = smul.addr %s312, 8
          %s314 = scalar_lea.vmem %s0, %s313
          %s315 = smul.u32 2, %s19
        $region56: #{autoencoder_forward.1} parent=51 // pred_fallthru
          _
      $region52: #{autoencoder_forward.1} parent=5 // pred_fallthru
        _
      %p316 = scmp.le.s32.totalorder 1, %s19
      %p317 = scmp.lt.s32.totalorder %s19, 5
      %p318 = pnand %p316, %p317
      %p319 = pneg %p318
      // Predicated region
      $region57: #{autoencoder_forward.1} parent=5 // pred_check
        _
      $region58: #{autoencoder_forward.1} parent=5 // pred_check_branch
        %321 = sbr.rel (%p318) target = $region60
      $region59: #{autoencoder_forward.1} parent=5 // pred_region
        %s322 = ssub.s32 %s19, 1
        %s323 = smul.u32 2, %s24
        %p324 = scmp.lt.s32.totalorder %s323, 7
        %s325 = scalar_select %p324, %s323, 7
        %s326 = smul.addr %s325, 7
        %s327 = smul.addr %s326, 8
        %s328 = scalar_lea.vmem %s0, %s327
        %p329 = pneg %p45
        %p330 = pneg %p42
        %p331 = pneg %p66
        %p332 = pneg %p63
        %p333 = pneg %p87
        %p334 = pneg %p84
        %p335 = pneg %p108
        %p336 = pneg %p105
        %p337 = pneg %p129
        %p338 = pneg %p126
        %p339 = pneg %p150
        %p340 = pneg %p147
        %p341 = pneg %p171
        %p342 = pneg %p168
        %p343 = pneg %p192
        %p344 = pneg %p189
        %p345 = pneg %p213
        %p346 = pneg %p210
        %p347 = pneg %p234
        %p348 = pneg %p231
        %p349 = pneg %p260
        %p350 = pneg %p257
        %s351 = sand.u32 %s247, 1
        %s352 = scalar_lea.sflag [#allocation3], %s351
        %s353 = sand.u32 %s247, 1
        %s354 = smul.addr %s353, 112
        %s355 = scalar_lea.vmem [#allocation2], %s354
        %s356 = smul.u32 2, %s24
        %p357 = scmp.lt.s32.totalorder %s356, 7
        %s358 = scalar_select %p357, %s356, 7
        %s359 = smul.addr %s358, 7
        %s360 = smul.addr %s359, 8
        %s361 = scalar_lea.vmem %s0, %s360
        %s362 = smul.u32 2, %s24
        %s363 = smul.u32 2, %s24
        %v365 = vld [vmem:[%s361] sm:$0xff]
        %v366 = vld [vmem:[%s361 + $0x8] sm:$0xff]
        %v367 = vld [vmem:[%s361 + $0x10] sm:$0xff]
        %v368 = vld [vmem:[%s361 + $0x18] sm:$0xff]
        %v369 = vld [vmem:[%s361 + $0x20] sm:$0xff]
        %v370 = vld [vmem:[%s361 + $0x28] sm:$0xff]
        %v371 = vld [vmem:[%s361 + $0x30] sm:$0xff]
        %v372 = vld [vmem:[%s361 + $0x38] sm:$0xff]
        %v373 = vld [vmem:[%s361 + $0x40] sm:$0xff]
        %v374 = vld [vmem:[%s361 + $0x48] sm:$0xff]
        %v375 = vld [vmem:[%s361 + $0x50] sm:$0xff]
        %v376 = vld [vmem:[%s361 + $0x58] sm:$0xff]
        %v377 = vld [vmem:[%s361 + $0x60] sm:$0xff]
        %v378 = vld [vmem:[%s361 + $0x68] sm:$0xff]
        %v379 = vld [vmem:[%s1] sm:$0xf]
        %v380 = vld [vmem:[%s1 + $0x4] sm:$0xf]
        %v381 = vld [vmem:[%s1 + $0x8] sm:$0xf]
        %v382 = vld [vmem:[%s1 + $0xc] sm:$0xf]
        %v383 = vld [vmem:[%s1 + $0x10] sm:$0xf]
        %v384 = vld [vmem:[%s1 + $0x14] sm:$0xf]
        %v385 = vld [vmem:[%s1 + $0x18] sm:$0xf]
        %v386 = vld [vmem:[%s1 + $0x1c] sm:$0xf]
        %v387 = vld [vmem:[%s1 + $0x20] sm:$0xf]
        %v388 = vld [vmem:[%s1 + $0x24] sm:$0xf]
        %v389 = vld [vmem:[%s1 + $0x28] sm:$0xf]
        %v390 = vld [vmem:[%s1 + $0x2c] sm:$0xf]
        %v391 = vld [vmem:[%s1 + $0x30] sm:$0xf]
        %v392 = vld [vmem:[%s1 + $0x34] sm:$0xf]
        %v393 = vld [vmem:[%s1 + $0x38] sm:$0xf]
        %v394 = vld [vmem:[%s1 + $0x3c] sm:$0xf]
        %v395 = vld [vmem:[%s1 + $0x40] sm:$0xf]
        %v396 = vld [vmem:[%s1 + $0x44] sm:$0xf]
        %v397 = vld [vmem:[%s1 + $0x48] sm:$0xf]
        %v398 = vld [vmem:[%s1 + $0x4c] sm:$0xf]
        %v399 = vld [vmem:[%s1 + $0x50] sm:$0xf]
        %v400 = vld [vmem:[%s1 + $0x54] sm:$0xf]
        %v401 = vld [vmem:[%s1 + $0x58] sm:$0xf]
        %v402 = vld [vmem:[%s1 + $0x5c] sm:$0xf]
        %v403 = vld [vmem:[%s1 + $0x60] sm:$0xf]
        %v404 = vld [vmem:[%s1 + $0x64] sm:$0xf]
        %v405 = vld [vmem:[%s1 + $0x68] sm:$0xf]
        %v406 = vld [vmem:[%s1 + $0x6c] sm:$0xf]
        %v407 = vld [vmem:[%s1 + $0x70] sm:$0xf]
        %v408 = vld [vmem:[%s1 + $0x74] sm:$0xf]
        %v409 = vld [vmem:[%s1 + $0x78] sm:$0xf]
        %v410 = vld [vmem:[%s1 + $0x7c] sm:$0xf]
        %v411 = vld [vmem:[%s1 + $0x80] sm:$0xf]
        %v412 = vld [vmem:[%s1 + $0x84] sm:$0xf]
        %v413 = vld [vmem:[%s1 + $0x88] sm:$0xf]
        %v414 = vld [vmem:[%s1 + $0x8c] sm:$0xf]
        %v415 = vld [vmem:[%s1 + $0x90] sm:$0xf]
        %v416 = vld [vmem:[%s1 + $0x94] sm:$0xf]
        %v417 = vld [vmem:[%s1 + $0x98] sm:$0xf]
        %v418 = vld [vmem:[%s1 + $0x9c] sm:$0xf]
        %v419 = vld [vmem:[%s1 + $0xa0] sm:$0xf]
        %v420 = vld [vmem:[%s1 + $0xa4] sm:$0xf]
        %v421 = vld [vmem:[%s1 + $0xa8] sm:$0xf]
        %v422 = vld [vmem:[%s1 + $0xac] sm:$0xf]
        %v423 = vld [vmem:[%s1 + $0xb0] sm:$0xf]
        %v424 = vld [vmem:[%s1 + $0xb4] sm:$0xf]
        %v425 = vld [vmem:[%s1 + $0xb8] sm:$0xf]
        %v426 = vld [vmem:[%s1 + $0xbc] sm:$0xf]
        %v427 = vld [vmem:[%s1 + $0xc0] sm:$0xf]
        %v428 = vld [vmem:[%s1 + $0xc4] sm:$0xf]
        %v429 = vld [vmem:[%s1 + $0xc8] sm:$0xf]
        %v430 = vld [vmem:[%s1 + $0xcc] sm:$0xf]
        %v431 = vld [vmem:[%s1 + $0xd0] sm:$0xf]
        %v432 = vld [vmem:[%s1 + $0xd4] sm:$0xf]
        %v433 = vld [vmem:[%s1 + $0xd8] sm:$0xf]
        %v434 = vld [vmem:[%s1 + $0xdc] sm:$0xf]
        %v435 = vld [vmem:[%s1 + $0xe0] sm:$0xf]
        %v436 = vld [vmem:[%s1 + $0xe4] sm:$0xf]
        %v437 = vld [vmem:[%s1 + $0xe8] sm:$0xf]
        %v438 = vld [vmem:[%s1 + $0xec] sm:$0xf]
        %v439 = vld [vmem:[%s1 + $0xf0] sm:$0xf]
        %v440 = vld [vmem:[%s1 + $0xf4] sm:$0xf]
        %v441 = vld [vmem:[%s1 + $0xf8] sm:$0xf]
        %v442 = vld [vmem:[%s1 + $0xfc] sm:$0xf]
        %v443 = vld [vmem:[%s1 + $0x100] sm:$0xf]
        %v444 = vld [vmem:[%s1 + $0x104] sm:$0xf]
        %v445 = vld [vmem:[%s1 + $0x108] sm:$0xf]
        %v446 = vld [vmem:[%s1 + $0x10c] sm:$0xf]
        %v447 = vld [vmem:[%s1 + $0x110] sm:$0xf]
        %v448 = vld [vmem:[%s1 + $0x114] sm:$0xf]
        %v449 = vld [vmem:[%s1 + $0x118] sm:$0xf]
        %v450 = vld [vmem:[%s1 + $0x11c] sm:$0xf]
        %v451 = vld [vmem:[%s1 + $0x120] sm:$0xf]
        %v452 = vld [vmem:[%s1 + $0x124] sm:$0xf]
        %v453 = vld [vmem:[%s1 + $0x128] sm:$0xf]
        %v454 = vld [vmem:[%s1 + $0x12c] sm:$0xf]
        %v455 = vld [vmem:[%s1 + $0x130] sm:$0xf]
        %v456 = vld [vmem:[%s1 + $0x134] sm:$0xf]
        %v457 = vld [vmem:[%s1 + $0x138] sm:$0xf]
        %v458 = vld [vmem:[%s1 + $0x13c] sm:$0xf]
        %v459 = vld [vmem:[%s1 + $0x140] sm:$0xf]
        %v460 = vld [vmem:[%s1 + $0x144] sm:$0xf]
        %v461 = vld [vmem:[%s1 + $0x148] sm:$0xf]
        %v462 = vld [vmem:[%s1 + $0x14c] sm:$0xf]
        %v463 = vld [vmem:[%s1 + $0x150] sm:$0xf]
        %v464 = vld [vmem:[%s1 + $0x154] sm:$0xf]
        %v465 = vld [vmem:[%s1 + $0x158] sm:$0xf]
        %v466 = vld [vmem:[%s1 + $0x15c] sm:$0xf]
        %v467 = vld [vmem:[%s1 + $0x160] sm:$0xf]
        %v468 = vld [vmem:[%s1 + $0x164] sm:$0xf]
        %v469 = vld [vmem:[%s1 + $0x168] sm:$0xf]
        %v470 = vld [vmem:[%s1 + $0x16c] sm:$0xf]
        %v471 = vld [vmem:[%s1 + $0x170] sm:$0xf]
        %v472 = vld [vmem:[%s1 + $0x174] sm:$0xf]
        %v473 = vld [vmem:[%s1 + $0x178] sm:$0xf]
        %v474 = vld [vmem:[%s1 + $0x17c] sm:$0xf]
        %v475 = vld [vmem:[%s1 + $0x180] sm:$0xf]
        %v476 = vld [vmem:[%s1 + $0x184] sm:$0xf]
        %v477 = vpack.c.bf16 %v372, %v365
        %v478 = vpack.c.bf16 %v373, %v366
        %v479 = vpack.c.bf16 %v374, %v367
        %v480 = vpack.c.bf16 %v375, %v368
        %v481 = vpack.c.bf16 %v376, %v369
        %v482 = vpack.c.bf16 %v377, %v370
        %v483 = vpack.c.bf16 %v378, %v371
        %v484 = vld [vmem:[%s9] ss:$0 sm:$0xff]
        %v583 = vunpack.c.l.b16 %v379
        %v584 = vunpack.c.l.b16 %v380
        %v585 = vunpack.c.l.b16 %v381
        %v586 = vunpack.c.l.b16 %v382
        %v587 = vunpack.c.l.b16 %v383
        %v588 = vunpack.c.l.b16 %v384
        %v589 = vunpack.c.l.b16 %v385
        %v590 = vunpack.c.l.b16 %v386
        %v591 = vunpack.c.l.b16 %v387
        %v592 = vunpack.c.l.b16 %v388
        %v593 = vunpack.c.l.b16 %v389
        %v594 = vunpack.c.l.b16 %v390
        %v595 = vunpack.c.l.b16 %v391
        %v596 = vunpack.c.l.b16 %v392
        %v597 = vunpack.c.l.b16 %v393
        %v598 = vunpack.c.l.b16 %v394
        %v599 = vunpack.c.l.b16 %v395
        %v600 = vunpack.c.l.b16 %v396
        %v601 = vunpack.c.l.b16 %v397
        %v602 = vunpack.c.l.b16 %v398
        %v603 = vunpack.c.l.b16 %v399
        %v604 = vunpack.c.l.b16 %v400
        %v605 = vunpack.c.l.b16 %v401
        %v606 = vunpack.c.l.b16 %v402
        %v607 = vunpack.c.l.b16 %v403
        %v608 = vunpack.c.l.b16 %v404
        %v609 = vunpack.c.l.b16 %v405
        %v610 = vunpack.c.l.b16 %v406
        %v611 = vunpack.c.l.b16 %v407
        %v612 = vunpack.c.l.b16 %v408
        %v613 = vunpack.c.l.b16 %v409
        %v614 = vunpack.c.l.b16 %v410
        %v615 = vunpack.c.l.b16 %v411
        %v616 = vunpack.c.l.b16 %v412
        %v617 = vunpack.c.l.b16 %v413
        %v618 = vunpack.c.l.b16 %v414
        %v619 = vunpack.c.l.b16 %v415
        %v620 = vunpack.c.l.b16 %v416
        %v621 = vunpack.c.l.b16 %v417
        %v622 = vunpack.c.l.b16 %v418
        %v623 = vunpack.c.l.b16 %v419
        %v624 = vunpack.c.l.b16 %v420
        %v625 = vunpack.c.l.b16 %v421
        %v626 = vunpack.c.l.b16 %v422
        %v627 = vunpack.c.l.b16 %v423
        %v628 = vunpack.c.l.b16 %v424
        %v629 = vunpack.c.l.b16 %v425
        %v630 = vunpack.c.l.b16 %v426
        %v631 = vunpack.c.l.b16 %v427
        %v632 = vunpack.c.l.b16 %v428
        %v633 = vunpack.c.l.b16 %v429
        %v634 = vunpack.c.l.b16 %v430
        %v635 = vunpack.c.l.b16 %v431
        %v636 = vunpack.c.l.b16 %v432
        %v637 = vunpack.c.l.b16 %v433
        %v638 = vunpack.c.l.b16 %v434
        %v639 = vunpack.c.l.b16 %v435
        %v640 = vunpack.c.l.b16 %v436
        %v641 = vunpack.c.l.b16 %v437
        %v642 = vunpack.c.l.b16 %v438
        %v643 = vunpack.c.l.b16 %v439
        %v644 = vunpack.c.l.b16 %v440
        %v645 = vunpack.c.l.b16 %v441
        %v646 = vunpack.c.l.b16 %v442
        %v647 = vunpack.c.l.b16 %v443
        %v648 = vunpack.c.l.b16 %v444
        %v649 = vunpack.c.l.b16 %v445
        %v650 = vunpack.c.l.b16 %v446
        %v651 = vunpack.c.l.b16 %v447
        %v652 = vunpack.c.l.b16 %v448
        %v653 = vunpack.c.l.b16 %v449
        %v654 = vunpack.c.l.b16 %v450
        %v655 = vunpack.c.l.b16 %v451
        %v656 = vunpack.c.l.b16 %v452
        %v657 = vunpack.c.l.b16 %v453
        %v658 = vunpack.c.l.b16 %v454
        %v659 = vunpack.c.l.b16 %v455
        %v660 = vunpack.c.l.b16 %v456
        %v661 = vunpack.c.l.b16 %v457
        %v662 = vunpack.c.l.b16 %v458
        %v663 = vunpack.c.l.b16 %v459
        %v664 = vunpack.c.l.b16 %v460
        %v665 = vunpack.c.l.b16 %v461
        %v666 = vunpack.c.l.b16 %v462
        %v667 = vunpack.c.l.b16 %v463
        %v668 = vunpack.c.l.b16 %v464
        %v669 = vunpack.c.l.b16 %v465
        %v670 = vunpack.c.l.b16 %v466
        %v671 = vunpack.c.l.b16 %v467
        %v672 = vunpack.c.l.b16 %v468
        %v673 = vunpack.c.l.b16 %v469
        %v674 = vunpack.c.l.b16 %v470
        %v675 = vunpack.c.l.b16 %v471
        %v676 = vunpack.c.l.b16 %v472
        %v677 = vunpack.c.l.b16 %v473
        %v678 = vunpack.c.l.b16 %v474
        %v679 = vunpack.c.l.b16 %v475
        %v680 = vunpack.c.l.b16 %v476
        %v681 = vpack.c.b16 %v584, %v583
        %v682 = vpack.c.b16 %v586, %v585
        %v683 = vpack.c.b16 %v588, %v587
        %v684 = vpack.c.b16 %v590, %v589
        %v685 = vpack.c.b16 %v592, %v591
        %v686 = vpack.c.b16 %v594, %v593
        %v687 = vpack.c.b16 %v596, %v595
        %v688 = vpack.c.b16 %v598, %v597
        %v689 = vpack.c.b16 %v600, %v599
        %v690 = vpack.c.b16 %v602, %v601
        %v691 = vpack.c.b16 %v604, %v603
        %v692 = vpack.c.b16 %v606, %v605
        %v693 = vpack.c.b16 %v608, %v607
        %v694 = vpack.c.b16 %v610, %v609
        %v695 = vpack.c.b16 %v612, %v611
        %v696 = vpack.c.b16 %v614, %v613
        %v697 = vpack.c.b16 %v616, %v615
        %v698 = vpack.c.b16 %v618, %v617
        %v699 = vpack.c.b16 %v620, %v619
        %v700 = vpack.c.b16 %v622, %v621
        %v701 = vpack.c.b16 %v624, %v623
        %v702 = vpack.c.b16 %v626, %v625
        %v703 = vpack.c.b16 %v628, %v627
        %v704 = vpack.c.b16 %v630, %v629
        %v705 = vpack.c.b16 %v632, %v631
        %v706 = vpack.c.b16 %v634, %v633
        %v707 = vpack.c.b16 %v636, %v635
        %v708 = vpack.c.b16 %v638, %v637
        %v709 = vpack.c.b16 %v640, %v639
        %v710 = vpack.c.b16 %v642, %v641
        %v711 = vpack.c.b16 %v644, %v643
        %v712 = vpack.c.b16 %v646, %v645
        %v713 = vpack.c.b16 %v648, %v647
        %v714 = vpack.c.b16 %v650, %v649
        %v715 = vpack.c.b16 %v652, %v651
        %v716 = vpack.c.b16 %v654, %v653
        %v717 = vpack.c.b16 %v656, %v655
        %v718 = vpack.c.b16 %v658, %v657
        %v719 = vpack.c.b16 %v660, %v659
        %v720 = vpack.c.b16 %v662, %v661
        %v721 = vpack.c.b16 %v664, %v663
        %v722 = vpack.c.b16 %v666, %v665
        %v723 = vpack.c.b16 %v668, %v667
        %v724 = vpack.c.b16 %v670, %v669
        %v725 = vpack.c.b16 %v672, %v671
        %v726 = vpack.c.b16 %v674, %v673
        %v727 = vpack.c.b16 %v676, %v675
        %v728 = vpack.c.b16 %v678, %v677
        %v729 = vpack.c.b16 %v680, %v679
        %vm779 = vcmask 130048
        %v781 = vsel %vm779, %v483, 0
        %783 = vmatprep.subr.bf16.mxu0 0
        %784 = vmatpush1.bf16.msra.mxu0 %v681
        %785 = vmatprep.subr.bf16.mxu0 0
        %786 = vmatpush1.bf16.msra.mxu0 %v682
        %787 = vmatprep.subr.bf16.mxu0 0
        %788 = vmatpush1.bf16.msra.mxu0 %v683
        %789 = vmatprep.subr.bf16.mxu0 0
        %790 = vmatpush1.bf16.msra.mxu0 %v684
        %791 = vmatprep.subr.bf16.mxu0 0
        %792 = vmatpush1.bf16.msra.mxu0 %v685
        %793 = vmatprep.subr.bf16.mxu0 0
        %794 = vmatpush1.bf16.msra.mxu0 %v686
        %795 = vmatprep.subr.bf16.mxu0 0
        %796 = vmatpush1.bf16.msra.mxu0 %v687
        %797 = vmatprep.subr.bf16.mxu0 0
        %798 = vmatpush1.bf16.msra.mxu0 %v688
        %799 = vmatprep.subr.bf16.mxu0 0
        %800 = vmatpush1.bf16.msra.mxu0 %v689
        %801 = vmatprep.subr.bf16.mxu0 0
        %802 = vmatpush1.bf16.msra.mxu0 %v690
        %803 = vmatprep.subr.bf16.mxu0 0
        %804 = vmatpush1.bf16.msra.mxu0 %v691
        %805 = vmatprep.subr.bf16.mxu0 0
        %806 = vmatpush1.bf16.msra.mxu0 %v692
        %807 = vmatprep.subr.bf16.mxu0 0
        %808 = vmatpush1.bf16.msra.mxu0 %v693
        %809 = vmatprep.subr.bf16.mxu0 0
        %810 = vmatpush1.bf16.msra.mxu0 %v694
        %811 = vmatprep.subr.bf16.mxu0 0
        %812 = vmatpush1.bf16.msra.mxu0 %v695
        %813 = vmatprep.subr.bf16.mxu0 0
        %814 = vmatpush1.bf16.msra.mxu0 %v696
        %815 = vmatprep.mubr.bf16.mxu0 %v478
        %816 = vmatmul.mubr.bf16.gmra.mrb[0].mxu0 %v477
        %v817 = vpop.f32.mrb[0].mxu0
        %v818 = vadd.f32 %v484, %v817
        %v819 = vpop.f32.mrb[0].mxu0
        %v820 = vpop.f32.mrb[0].mxu0
        %v821 = vadd.f32 %v484, %v820
        %v822 = vpop.f32.mrb[0].mxu0
        %823 = vdwg.mxu0
        %824 = vmatprep.subr.bf16.mxu0 0
        %825 = vmatpush1.bf16.msra.mxu0 %v697
        %826 = vmatprep.subr.bf16.mxu0 0
        %827 = vmatpush1.bf16.msra.mxu0 %v698
        %828 = vmatprep.subr.bf16.mxu0 0
        %829 = vmatpush1.bf16.msra.mxu0 %v699
        %830 = vmatprep.subr.bf16.mxu0 0
        %831 = vmatpush1.bf16.msra.mxu0 %v700
        %832 = vmatprep.subr.bf16.mxu0 0
        %833 = vmatpush1.bf16.msra.mxu0 %v701
        %834 = vmatprep.subr.bf16.mxu0 0
        %835 = vmatpush1.bf16.msra.mxu0 %v702
        %836 = vmatprep.subr.bf16.mxu0 0
        %837 = vmatpush1.bf16.msra.mxu0 %v703
        %838 = vmatprep.subr.bf16.mxu0 0
        %839 = vmatpush1.bf16.msra.mxu0 %v704
        %840 = vmatprep.subr.bf16.mxu0 0
        %841 = vmatpush1.bf16.msra.mxu0 %v705
        %842 = vmatprep.subr.bf16.mxu0 0
        %843 = vmatpush1.bf16.msra.mxu0 %v706
        %844 = vmatprep.subr.bf16.mxu0 0
        %845 = vmatpush1.bf16.msra.mxu0 %v707
        %846 = vmatprep.subr.bf16.mxu0 0
        %847 = vmatpush1.bf16.msra.mxu0 %v708
        %848 = vmatprep.subr.bf16.mxu0 0
        %849 = vmatpush1.bf16.msra.mxu0 %v709
        %850 = vmatprep.subr.bf16.mxu0 0
        %851 = vmatpush1.bf16.msra.mxu0 %v710
        %852 = vmatprep.subr.bf16.mxu0 0
        %853 = vmatpush1.bf16.msra.mxu0 %v711
        %854 = vmatprep.subr.bf16.mxu0 0
        %855 = vmatpush1.bf16.msra.mxu0 %v712
        %856 = vmatprep.mubr.bf16.mxu0 %v480
        %857 = vmatmul.mubr.bf16.gmra.mrb[0].mxu0 %v479
        %v858 = vpop.f32.mrb[0].mxu0
        %v859 = vadd.f32 %v818, %v858
        %v860 = vpop.f32.mrb[0].mxu0
        %v861 = vpop.f32.mrb[0].mxu0
        %v862 = vadd.f32 %v821, %v861
        %v863 = vpop.f32.mrb[0].mxu0
        %864 = vdwg.mxu0
        %865 = vmatprep.subr.bf16.mxu0 0
        %866 = vmatpush1.bf16.msra.mxu0 %v713
        %867 = vmatprep.subr.bf16.mxu0 0
        %868 = vmatpush1.bf16.msra.mxu0 %v714
        %869 = vmatprep.subr.bf16.mxu0 0
        %870 = vmatpush1.bf16.msra.mxu0 %v715
        %871 = vmatprep.subr.bf16.mxu0 0
        %872 = vmatpush1.bf16.msra.mxu0 %v716
        %873 = vmatprep.subr.bf16.mxu0 0
        %874 = vmatpush1.bf16.msra.mxu0 %v717
        %875 = vmatprep.subr.bf16.mxu0 0
        %876 = vmatpush1.bf16.msra.mxu0 %v718
        %877 = vmatprep.subr.bf16.mxu0 0
        %878 = vmatpush1.bf16.msra.mxu0 %v719
        %879 = vmatprep.subr.bf16.mxu0 0
        %880 = vmatpush1.bf16.msra.mxu0 %v720
        %881 = vmatprep.subr.bf16.mxu0 0
        %882 = vmatpush1.bf16.msra.mxu0 %v721
        %883 = vmatprep.subr.bf16.mxu0 0
        %884 = vmatpush1.bf16.msra.mxu0 %v722
        %885 = vmatprep.subr.bf16.mxu0 0
        %886 = vmatpush1.bf16.msra.mxu0 %v723
        %887 = vmatprep.subr.bf16.mxu0 0
        %888 = vmatpush1.bf16.msra.mxu0 %v724
        %889 = vmatprep.subr.bf16.mxu0 0
        %890 = vmatpush1.bf16.msra.mxu0 %v725
        %891 = vmatprep.subr.bf16.mxu0 0
        %892 = vmatpush1.bf16.msra.mxu0 %v726
        %893 = vmatprep.subr.bf16.mxu0 0
        %894 = vmatpush1.bf16.msra.mxu0 %v727
        %895 = vmatprep.subr.bf16.mxu0 0
        %896 = vmatpush1.bf16.msra.mxu0 %v728
        %897 = vmatprep.mubr.bf16.mxu0 %v482
        %898 = vmatmul.mubr.bf16.gmra.mrb[0].mxu0 %v481
        %v899 = vpop.f32.mrb[0].mxu0
        %v900 = vadd.f32 %v859, %v899
        %v901 = vpop.f32.mrb[0].mxu0
        %v902 = vpop.f32.mrb[0].mxu0
        %v903 = vadd.f32 %v862, %v902
        %v904 = vpop.f32.mrb[0].mxu0
        %905 = vdwg.mxu0
        %906 = vmatprep.subr.bf16.mxu0 0
        %907 = vmatpush1.bf16.msra.mxu0 %v729
        %908 = vmatprep.subr.bf16.mxu0 0
        %909 = vmatpush1.bf16.msra.mxu0 0
        %910 = vmatprep.subr.bf16.mxu0 0
        %911 = vmatpush1.bf16.msra.mxu0 0
        %912 = vmatprep.subr.bf16.mxu0 0
        %913 = vmatpush1.bf16.msra.mxu0 0
        %914 = vmatprep.subr.bf16.mxu0 0
        %915 = vmatpush1.bf16.msra.mxu0 0
        %916 = vmatprep.subr.bf16.mxu0 0
        %917 = vmatpush1.bf16.msra.mxu0 0
        %918 = vmatprep.subr.bf16.mxu0 0
        %919 = vmatpush1.bf16.msra.mxu0 0
        %920 = vmatprep.subr.bf16.mxu0 0
        %921 = vmatpush1.bf16.msra.mxu0 0
        %922 = vmatprep.subr.bf16.mxu0 0
        %923 = vmatpush1.bf16.msra.mxu0 0
        %924 = vmatprep.subr.bf16.mxu0 0
        %925 = vmatpush1.bf16.msra.mxu0 0
        %926 = vmatprep.subr.bf16.mxu0 0
        %927 = vmatpush1.bf16.msra.mxu0 0
        %928 = vmatprep.subr.bf16.mxu0 0
        %929 = vmatpush1.bf16.msra.mxu0 0
        %930 = vmatprep.subr.bf16.mxu0 0
        %931 = vmatpush1.bf16.msra.mxu0 0
        %932 = vmatprep.subr.bf16.mxu0 0
        %933 = vmatpush1.bf16.msra.mxu0 0
        %934 = vmatprep.subr.bf16.mxu0 0
        %935 = vmatpush1.bf16.msra.mxu0 0
        %936 = vmatprep.subr.bf16.mxu0 0
        %937 = vmatpush1.bf16.msra.mxu0 0
        %938 = vmatprep.mubr.bf16.mxu0 0
        %939 = vmatmul.mubr.bf16.gmra.mrb[0].mxu0 %v781
        %v940 = vpop.f32.mrb[0].mxu0
        %v941 = vadd.f32 %v900, %v940
        %v942 = vpop.f32.mrb[0].mxu0
        %v943 = vpop.f32.mrb[0].mxu0
        %v944 = vadd.f32 %v903, %v943
        %v945 = vpop.f32.mrb[0].mxu0
        %946 = vdwg.mxu0
        %v947 = vmax.f32 %v941, 0.0
        %v948 = vmax.f32 %v944, 0.0
        %v949 = vld [vmem:[%s2] sm:$0xf]
        %v950 = vld [vmem:[%s2 + $0x4] sm:$0xf]
        %v951 = vld [vmem:[%s2 + $0x8] sm:$0xf]
        %v952 = vld [vmem:[%s2 + $0xc] sm:$0xf]
        %v953 = vld [vmem:[%s2 + $0x10] sm:$0xf]
        %v954 = vld [vmem:[%s2 + $0x14] sm:$0xf]
        %v955 = vld [vmem:[%s2 + $0x18] sm:$0xf]
        %v956 = vld [vmem:[%s2 + $0x1c] sm:$0xf]
        %v957 = vld [vmem:[%s2 + $0x20] sm:$0xf]
        %v958 = vld [vmem:[%s2 + $0x24] sm:$0xf]
        %v959 = vld [vmem:[%s2 + $0x28] sm:$0xf]
        %v960 = vld [vmem:[%s2 + $0x2c] sm:$0xf]
        %v961 = vld [vmem:[%s2 + $0x30] sm:$0xf]
        %v962 = vld [vmem:[%s2 + $0x34] sm:$0xf]
        %v963 = vld [vmem:[%s2 + $0x38] sm:$0xf]
        %v964 = vld [vmem:[%s2 + $0x3c] sm:$0xf]
        %v965 = vpack.c.bf16 %v948, %v947
        %v966 = vld [vmem:[%s9 + $0x1] ss:$0 sm:$0xff]
        %v983 = vunpack.c.l.b16 %v949
        %v984 = vunpack.c.l.b16 %v950
        %v985 = vunpack.c.l.b16 %v951
        %v986 = vunpack.c.l.b16 %v952
        %v987 = vunpack.c.l.b16 %v953
        %v988 = vunpack.c.l.b16 %v954
        %v989 = vunpack.c.l.b16 %v955
        %v990 = vunpack.c.l.b16 %v956
        %v991 = vunpack.c.l.b16 %v957
        %v992 = vunpack.c.l.b16 %v958
        %v993 = vunpack.c.l.b16 %v959
        %v994 = vunpack.c.l.b16 %v960
        %v995 = vunpack.c.l.b16 %v961
        %v996 = vunpack.c.l.b16 %v962
        %v997 = vunpack.c.l.b16 %v963
        %v998 = vunpack.c.l.b16 %v964
        %v999 = vpack.c.b16 %v984, %v983
        %v1000 = vpack.c.b16 %v986, %v985
        %v1001 = vpack.c.b16 %v988, %v987
        %v1002 = vpack.c.b16 %v990, %v989
        %v1003 = vpack.c.b16 %v992, %v991
        %v1004 = vpack.c.b16 %v994, %v993
        %v1005 = vpack.c.b16 %v996, %v995
        %v1006 = vpack.c.b16 %v998, %v997
        %1015 = vmatprep.subr.bf16.mxu0 0
        %1016 = vmatpush1.bf16.msra.mxu0 %v999
        %1017 = vmatprep.subr.bf16.mxu0 0
        %1018 = vmatpush1.bf16.msra.mxu0 %v1000
        %1019 = vmatprep.subr.bf16.mxu0 0
        %1020 = vmatpush1.bf16.msra.mxu0 %v1001
        %1021 = vmatprep.subr.bf16.mxu0 0
        %1022 = vmatpush1.bf16.msra.mxu0 %v1002
        %1023 = vmatprep.subr.bf16.mxu0 0
        %1024 = vmatpush1.bf16.msra.mxu0 %v1003
        %1025 = vmatprep.subr.bf16.mxu0 0
        %1026 = vmatpush1.bf16.msra.mxu0 %v1004
        %1027 = vmatprep.subr.bf16.mxu0 0
        %1028 = vmatpush1.bf16.msra.mxu0 %v1005
        %1029 = vmatprep.subr.bf16.mxu0 0
        %1030 = vmatpush1.bf16.msra.mxu0 %v1006
        %1031 = vmatprep.subr.bf16.mxu0 0
        %1032 = vmatpush1.bf16.msra.mxu0 0
        %1033 = vmatprep.subr.bf16.mxu0 0
        %1034 = vmatpush1.bf16.msra.mxu0 0
        %1035 = vmatprep.subr.bf16.mxu0 0
        %1036 = vmatpush1.bf16.msra.mxu0 0
        %1037 = vmatprep.subr.bf16.mxu0 0
        %1038 = vmatpush1.bf16.msra.mxu0 0
        %1039 = vmatprep.subr.bf16.mxu0 0
        %1040 = vmatpush1.bf16.msra.mxu0 0
        %1041 = vmatprep.subr.bf16.mxu0 0
        %1042 = vmatpush1.bf16.msra.mxu0 0
        %1043 = vmatprep.subr.bf16.mxu0 0
        %1044 = vmatpush1.bf16.msra.mxu0 0
        %1045 = vmatprep.subr.bf16.mxu0 0
        %1046 = vmatpush1.bf16.msra.mxu0 0
        %1047 = vmatprep.mubr.bf16.mxu0 0
        %1048 = vmatmul.mubr.bf16.gmra.mrb[0].mxu0 %v965
        %v1049 = vpop.f32.mrb[0].mxu0
        %v1050 = vadd.f32 %v966, %v1049
        %v1051 = vpop.f32.mrb[0].mxu0
        %v1052 = vpop.f32.mrb[0].mxu0
        %v1053 = vadd.f32 %v966, %v1052
        %v1054 = vpop.f32.mrb[0].mxu0
        %1055 = vdwg.mxu0
        %v1056 = vmax.f32 %v1050, 0.0
        %v1057 = vmax.f32 %v1053, 0.0
        %v1058 = vld [vmem:[%s3] sm:$0xff]
        %v1059 = vld [vmem:[%s3 + $0x8] sm:$0xff]
        %v1060 = vld [vmem:[%s3 + $0x10] sm:$0xff]
        %v1061 = vld [vmem:[%s3 + $0x18] sm:$0xff]
        %v1062 = vld [vmem:[%s3 + $0x20] sm:$0xff]
        %v1063 = vld [vmem:[%s3 + $0x28] sm:$0xff]
        %v1064 = vld [vmem:[%s3 + $0x30] sm:$0xff]
        %v1065 = vld [vmem:[%s3 + $0x38] sm:$0xff]
        %v1066 = vld [vmem:[%s9 + $0x2] ss:$0 sm:$0xff]
        %vm1067 = vcmask 523264
        %v1069 = vsel %vm1067, %v1056, 0
        %v1072 = vsel %vm1067, %v1057, 0
        %1074 = vmatprep.subr.mxu0 0.0
        %1075 = vmatpush1.msra.mxu0 %v1058
        %1076 = vmatprep.subr.mxu0 0.0
        %1077 = vmatpush1.msra.mxu0 %v1059
        %1078 = vmatprep.subr.mxu0 0.0
        %1079 = vmatpush1.msra.mxu0 %v1060
        %1080 = vmatprep.subr.mxu0 0.0
        %1081 = vmatpush1.msra.mxu0 %v1061
        %1082 = vmatprep.subr.mxu0 0.0
        %1083 = vmatpush1.msra.mxu0 %v1062
        %1084 = vmatprep.subr.mxu0 0.0
        %1085 = vmatpush1.msra.mxu0 %v1063
        %1086 = vmatprep.subr.mxu0 0.0
        %1087 = vmatpush1.msra.mxu0 %v1064
        %1088 = vmatprep.subr.mxu0 0.0
        %1089 = vmatpush1.msra.mxu0 %v1065
        %1090 = vmatprep.subr.mxu0 0.0
        %1091 = vmatpush1.msra.mxu0 0.0
        %1092 = vmatprep.subr.mxu0 0.0
        %1093 = vmatpush1.msra.mxu0 0.0
        %1094 = vmatprep.subr.mxu0 0.0
        %1095 = vmatpush1.msra.mxu0 0.0
        %1096 = vmatprep.subr.mxu0 0.0
        %1097 = vmatpush1.msra.mxu0 0.0
        %1098 = vmatprep.subr.mxu0 0.0
        %1099 = vmatpush1.msra.mxu0 0.0
        %1100 = vmatprep.subr.mxu0 0.0
        %1101 = vmatpush1.msra.mxu0 0.0
        %1102 = vmatprep.subr.mxu0 0.0
        %1103 = vmatpush1.msra.mxu0 0.0
        %1104 = vmatprep.subr.mxu0 0.0
        %1105 = vmatpush1.msra.mxu0 0.0
        %1106 = vmatprep.subr.mxu0 0.0
        %1107 = vmatpush1.msra.mxu0 0.0
        %1108 = vmatprep.subr.mxu0 0.0
        %1109 = vmatpush1.msra.mxu0 0.0
        %1110 = vmatprep.subr.mxu0 0.0
        %1111 = vmatpush1.msra.mxu0 0.0
        %1112 = vmatprep.subr.mxu0 0.0
        %1113 = vmatpush1.msra.mxu0 0.0
        %1114 = vmatprep.subr.mxu0 0.0
        %1115 = vmatpush1.msra.mxu0 0.0
        %1116 = vmatprep.subr.mxu0 0.0
        %1117 = vmatpush1.msra.mxu0 0.0
        %1118 = vmatprep.subr.mxu0 0.0
        %1119 = vmatpush1.msra.mxu0 0.0
        %1120 = vmatprep.subr.mxu0 0.0
        %1121 = vmatpush1.msra.mxu0 0.0
        %1122 = vmatprep.subr.mxu0 0.0
        %1123 = vmatpush1.msra.mxu0 0.0
        %1124 = vmatprep.subr.mxu0 0.0
        %1125 = vmatpush1.msra.mxu0 0.0
        %1126 = vmatprep.subr.mxu0 0.0
        %1127 = vmatpush1.msra.mxu0 0.0
        %1128 = vmatprep.subr.mxu0 0.0
        %1129 = vmatpush1.msra.mxu0 0.0
        %1130 = vmatprep.subr.mxu0 0.0
        %1131 = vmatpush1.msra.mxu0 0.0
        %1132 = vmatprep.subr.mxu0 0.0
        %1133 = vmatpush1.msra.mxu0 0.0
        %1134 = vmatprep.subr.mxu0 0.0
        %1135 = vmatpush1.msra.mxu0 0.0
        %1136 = vmatprep.subr.mxu0 0.0
        %1137 = vmatpush1.msra.mxu0 0.0
        %1138 = vmatprep.mubr.f32.mxu0 0.0
        %1139 = vmatmul.mubr.f32.gmra.mrb[0].mxu0 %v1069
        %v1140 = vpop.f32.mrb[0].mxu0
        %v1141 = vadd.f32 %v1066, %v1140
        %v1142 = vpop.f32.mrb[0].mxu0
        %1143 = vmatprep.mubr.f32.mxu0 0.0
        %1144 = vmatmul.mubr.f32.gmra.mrb[0].mxu0 %v1072
        %v1145 = vpop.f32.mrb[0].mxu0
        %v1146 = vadd.f32 %v1066, %v1145
        %v1147 = vpop.f32.mrb[0].mxu0
        %1148 = vdwg.mxu0
        %v1149 = vmax.f32 %v1141, 0.0
        %v1150 = vmax.f32 %v1146, 0.0
        %v1151 = vld [vmem:[%s4] sm:$0xff]
        %v1152 = vld [vmem:[%s4 + $0x8] sm:$0xf]
        %v1153 = vld [vmem:[%s9 + $0x3] ss:$0 sm:$0xff]
        %vm1154 = vcmask 97280
        %v1156 = vsel %vm1154, %v1149, 0
        %v1159 = vsel %vm1154, %v1150, 0
        %vm1161 = vcmask 1043456
        %v1163 = vsel %vm1161, %v1152, 0
        %1165 = vmatprep.subr.mxu0 0.0
        %1166 = vmatpush1.msra.mxu0 %v1151
        %1167 = vmatprep.subr.mxu0 0.0
        %1168 = vmatpush1.msra.mxu0 %v1163
        %1169 = vmatprep.subr.mxu0 0.0
        %1170 = vmatpush1.msra.mxu0 0.0
        %1171 = vmatprep.subr.mxu0 0.0
        %1172 = vmatpush1.msra.mxu0 0.0
        %1173 = vmatprep.subr.mxu0 0.0
        %1174 = vmatpush1.msra.mxu0 0.0
        %1175 = vmatprep.subr.mxu0 0.0
        %1176 = vmatpush1.msra.mxu0 0.0
        %1177 = vmatprep.subr.mxu0 0.0
        %1178 = vmatpush1.msra.mxu0 0.0
        %1179 = vmatprep.subr.mxu0 0.0
        %1180 = vmatpush1.msra.mxu0 0.0
        %1181 = vmatprep.subr.mxu0 0.0
        %1182 = vmatpush1.msra.mxu0 0.0
        %1183 = vmatprep.subr.mxu0 0.0
        %1184 = vmatpush1.msra.mxu0 0.0
        %1185 = vmatprep.subr.mxu0 0.0
        %1186 = vmatpush1.msra.mxu0 0.0
        %1187 = vmatprep.subr.mxu0 0.0
        %1188 = vmatpush1.msra.mxu0 0.0
        %1189 = vmatprep.subr.mxu0 0.0
        %1190 = vmatpush1.msra.mxu0 0.0
        %1191 = vmatprep.subr.mxu0 0.0
        %1192 = vmatpush1.msra.mxu0 0.0
        %1193 = vmatprep.subr.mxu0 0.0
        %1194 = vmatpush1.msra.mxu0 0.0
        %1195 = vmatprep.subr.mxu0 0.0
        %1196 = vmatpush1.msra.mxu0 0.0
        %1197 = vmatprep.subr.mxu0 0.0
        %1198 = vmatpush1.msra.mxu0 0.0
        %1199 = vmatprep.subr.mxu0 0.0
        %1200 = vmatpush1.msra.mxu0 0.0
        %1201 = vmatprep.subr.mxu0 0.0
        %1202 = vmatpush1.msra.mxu0 0.0
        %1203 = vmatprep.subr.mxu0 0.0
        %1204 = vmatpush1.msra.mxu0 0.0
        %1205 = vmatprep.subr.mxu0 0.0
        %1206 = vmatpush1.msra.mxu0 0.0
        %1207 = vmatprep.subr.mxu0 0.0
        %1208 = vmatpush1.msra.mxu0 0.0
        %1209 = vmatprep.subr.mxu0 0.0
        %1210 = vmatpush1.msra.mxu0 0.0
        %1211 = vmatprep.subr.mxu0 0.0
        %1212 = vmatpush1.msra.mxu0 0.0
        %1213 = vmatprep.subr.mxu0 0.0
        %1214 = vmatpush1.msra.mxu0 0.0
        %1215 = vmatprep.subr.mxu0 0.0
        %1216 = vmatpush1.msra.mxu0 0.0
        %1217 = vmatprep.subr.mxu0 0.0
        %1218 = vmatpush1.msra.mxu0 0.0
        %1219 = vmatprep.subr.mxu0 0.0
        %1220 = vmatpush1.msra.mxu0 0.0
        %1221 = vmatprep.subr.mxu0 0.0
        %1222 = vmatpush1.msra.mxu0 0.0
        %1223 = vmatprep.subr.mxu0 0.0
        %1224 = vmatpush1.msra.mxu0 0.0
        %1225 = vmatprep.subr.mxu0 0.0
        %1226 = vmatpush1.msra.mxu0 0.0
        %1227 = vmatprep.subr.mxu0 0.0
        %1228 = vmatpush1.msra.mxu0 0.0
        %1229 = vmatprep.mubr.f32.mxu0 0.0
        %1230 = vmatmul.mubr.f32.gmra.mrb[0].mxu0 %v1156
        %v1231 = vpop.f32.mrb[0].mxu0
        %v1232 = vadd.f32 %v1153, %v1231
        %v1233 = vpop.f32.mrb[0].mxu0
        %1234 = vmatprep.mubr.f32.mxu0 0.0
        %1235 = vmatmul.mubr.f32.gmra.mrb[0].mxu0 %v1159
        %v1236 = vpop.f32.mrb[0].mxu0
        %v1237 = vadd.f32 %v1153, %v1236
        %v1238 = vpop.f32.mrb[0].mxu0
        %1239 = vdwg.mxu0
        %v1240 = vld [vmem:[%s5] sm:$0x7]
        %v1241 = vld [vmem:[%s9 + $0x4] ss:$0 sm:$0xff]
        %vm1242 = vcmask 23552
        %v1244 = vsel %vm1242, %v1232, 0
        %v1247 = vsel %vm1242, %v1237, 0
        %vm1249 = vcmask 1042432
        %v1251 = vsel %vm1249, %v1240, 0
        %1253 = vmatprep.subr.mxu0 0.0
        %1254 = vmatpush1.msra.mxu0 %v1251
        %1255 = vmatprep.subr.mxu0 0.0
        %1256 = vmatpush1.msra.mxu0 0.0
        %1257 = vmatprep.subr.mxu0 0.0
        %1258 = vmatpush1.msra.mxu0 0.0
        %1259 = vmatprep.subr.mxu0 0.0
        %1260 = vmatpush1.msra.mxu0 0.0
        %1261 = vmatprep.subr.mxu0 0.0
        %1262 = vmatpush1.msra.mxu0 0.0
        %1263 = vmatprep.subr.mxu0 0.0
        %1264 = vmatpush1.msra.mxu0 0.0
        %1265 = vmatprep.subr.mxu0 0.0
        %1266 = vmatpush1.msra.mxu0 0.0
        %1267 = vmatprep.subr.mxu0 0.0
        %1268 = vmatpush1.msra.mxu0 0.0
        %1269 = vmatprep.subr.mxu0 0.0
        %1270 = vmatpush1.msra.mxu0 0.0
        %1271 = vmatprep.subr.mxu0 0.0
        %1272 = vmatpush1.msra.mxu0 0.0
        %1273 = vmatprep.subr.mxu0 0.0
        %1274 = vmatpush1.msra.mxu0 0.0
        %1275 = vmatprep.subr.mxu0 0.0
        %1276 = vmatpush1.msra.mxu0 0.0
        %1277 = vmatprep.subr.mxu0 0.0
        %1278 = vmatpush1.msra.mxu0 0.0
        %1279 = vmatprep.subr.mxu0 0.0
        %1280 = vmatpush1.msra.mxu0 0.0
        %1281 = vmatprep.subr.mxu0 0.0
        %1282 = vmatpush1.msra.mxu0 0.0
        %1283 = vmatprep.subr.mxu0 0.0
        %1284 = vmatpush1.msra.mxu0 0.0
        %1285 = vmatprep.subr.mxu0 0.0
        %1286 = vmatpush1.msra.mxu0 0.0
        %1287 = vmatprep.subr.mxu0 0.0
        %1288 = vmatpush1.msra.mxu0 0.0
        %1289 = vmatprep.subr.mxu0 0.0
        %1290 = vmatpush1.msra.mxu0 0.0
        %1291 = vmatprep.subr.mxu0 0.0
        %1292 = vmatpush1.msra.mxu0 0.0
        %1293 = vmatprep.subr.mxu0 0.0
        %1294 = vmatpush1.msra.mxu0 0.0
        %1295 = vmatprep.subr.mxu0 0.0
        %1296 = vmatpush1.msra.mxu0 0.0
        %1297 = vmatprep.subr.mxu0 0.0
        %1298 = vmatpush1.msra.mxu0 0.0
        %1299 = vmatprep.subr.mxu0 0.0
        %1300 = vmatpush1.msra.mxu0 0.0
        %1301 = vmatprep.subr.mxu0 0.0
        %1302 = vmatpush1.msra.mxu0 0.0
        %1303 = vmatprep.subr.mxu0 0.0
        %1304 = vmatpush1.msra.mxu0 0.0
        %1305 = vmatprep.subr.mxu0 0.0
        %1306 = vmatpush1.msra.mxu0 0.0
        %1307 = vmatprep.subr.mxu0 0.0
        %1308 = vmatpush1.msra.mxu0 0.0
        %1309 = vmatprep.subr.mxu0 0.0
        %1310 = vmatpush1.msra.mxu0 0.0
        %1311 = vmatprep.subr.mxu0 0.0
        %1312 = vmatpush1.msra.mxu0 0.0
        %1313 = vmatprep.subr.mxu0 0.0
        %1314 = vmatpush1.msra.mxu0 0.0
        %1315 = vmatprep.subr.mxu0 0.0
        %1316 = vmatpush1.msra.mxu0 0.0
        %1317 = vmatprep.mubr.f32.mxu0 0.0
        %1318 = vmatmul.mubr.f32.gmra.mrb[0].mxu0 %v1244
        %v1319 = vpop.f32.mrb[0].mxu0
        %v1320 = vadd.f32 %v1241, %v1319
        %v1321 = vpop.f32.mrb[0].mxu0
        %1322 = vmatprep.mubr.f32.mxu0 0.0
        %1323 = vmatmul.mubr.f32.gmra.mrb[0].mxu0 %v1247
        %v1324 = vpop.f32.mrb[0].mxu0
        %v1325 = vadd.f32 %v1241, %v1324
        %v1326 = vpop.f32.mrb[0].mxu0
        %1327 = vdwg.mxu0
        %v1328 = vmax.f32 %v1320, 0.0
        %v1329 = vmax.f32 %v1325, 0.0
        %v1330 = vld [vmem:[%s6] sm:$0xff]
        %v1331 = vld [vmem:[%s6 + $0x8] sm:$0xf]
        %v1332 = vld [vmem:[%s9 + $0x5] ss:$0 sm:$0xff]
        %v1334 = vsel %vm1154, %v1328, 0
        %v1337 = vsel %vm1154, %v1329, 0
        %v1340 = vsel %vm1161, %v1331, 0
        %1342 = vmatprep.subr.mxu0 0.0
        %1343 = vmatpush1.msra.mxu0 %v1330
        %1344 = vmatprep.subr.mxu0 0.0
        %1345 = vmatpush1.msra.mxu0 %v1340
        %1346 = vmatprep.subr.mxu0 0.0
        %1347 = vmatpush1.msra.mxu0 0.0
        %1348 = vmatprep.subr.mxu0 0.0
        %1349 = vmatpush1.msra.mxu0 0.0
        %1350 = vmatprep.subr.mxu0 0.0
        %1351 = vmatpush1.msra.mxu0 0.0
        %1352 = vmatprep.subr.mxu0 0.0
        %1353 = vmatpush1.msra.mxu0 0.0
        %1354 = vmatprep.subr.mxu0 0.0
        %1355 = vmatpush1.msra.mxu0 0.0
        %1356 = vmatprep.subr.mxu0 0.0
        %1357 = vmatpush1.msra.mxu0 0.0
        %1358 = vmatprep.subr.mxu0 0.0
        %1359 = vmatpush1.msra.mxu0 0.0
        %1360 = vmatprep.subr.mxu0 0.0
        %1361 = vmatpush1.msra.mxu0 0.0
        %1362 = vmatprep.subr.mxu0 0.0
        %1363 = vmatpush1.msra.mxu0 0.0
        %1364 = vmatprep.subr.mxu0 0.0
        %1365 = vmatpush1.msra.mxu0 0.0
        %1366 = vmatprep.subr.mxu0 0.0
        %1367 = vmatpush1.msra.mxu0 0.0
        %1368 = vmatprep.subr.mxu0 0.0
        %1369 = vmatpush1.msra.mxu0 0.0
        %1370 = vmatprep.subr.mxu0 0.0
        %1371 = vmatpush1.msra.mxu0 0.0
        %1372 = vmatprep.subr.mxu0 0.0
        %1373 = vmatpush1.msra.mxu0 0.0
        %1374 = vmatprep.subr.mxu0 0.0
        %1375 = vmatpush1.msra.mxu0 0.0
        %1376 = vmatprep.subr.mxu0 0.0
        %1377 = vmatpush1.msra.mxu0 0.0
        %1378 = vmatprep.subr.mxu0 0.0
        %1379 = vmatpush1.msra.mxu0 0.0
        %1380 = vmatprep.subr.mxu0 0.0
        %1381 = vmatpush1.msra.mxu0 0.0
        %1382 = vmatprep.subr.mxu0 0.0
        %1383 = vmatpush1.msra.mxu0 0.0
        %1384 = vmatprep.subr.mxu0 0.0
        %1385 = vmatpush1.msra.mxu0 0.0
        %1386 = vmatprep.subr.mxu0 0.0
        %1387 = vmatpush1.msra.mxu0 0.0
        %1388 = vmatprep.subr.mxu0 0.0
        %1389 = vmatpush1.msra.mxu0 0.0
        %1390 = vmatprep.subr.mxu0 0.0
        %1391 = vmatpush1.msra.mxu0 0.0
        %1392 = vmatprep.subr.mxu0 0.0
        %1393 = vmatpush1.msra.mxu0 0.0
        %1394 = vmatprep.subr.mxu0 0.0
        %1395 = vmatpush1.msra.mxu0 0.0
        %1396 = vmatprep.subr.mxu0 0.0
        %1397 = vmatpush1.msra.mxu0 0.0
        %1398 = vmatprep.subr.mxu0 0.0
        %1399 = vmatpush1.msra.mxu0 0.0
        %1400 = vmatprep.subr.mxu0 0.0
        %1401 = vmatpush1.msra.mxu0 0.0
        %1402 = vmatprep.subr.mxu0 0.0
        %1403 = vmatpush1.msra.mxu0 0.0
        %1404 = vmatprep.subr.mxu0 0.0
        %1405 = vmatpush1.msra.mxu0 0.0
        %1406 = vmatprep.mubr.f32.mxu0 0.0
        %1407 = vmatmul.mubr.f32.gmra.mrb[0].mxu0 %v1334
        %v1408 = vpop.f32.mrb[0].mxu0
        %v1409 = vadd.f32 %v1332, %v1408
        %v1410 = vpop.f32.mrb[0].mxu0
        %1411 = vmatprep.mubr.f32.mxu0 0.0
        %1412 = vmatmul.mubr.f32.gmra.mrb[0].mxu0 %v1337
        %v1413 = vpop.f32.mrb[0].mxu0
        %v1414 = vadd.f32 %v1332, %v1413
        %v1415 = vpop.f32.mrb[0].mxu0
        %1416 = vdwg.mxu0
        %v1417 = vmax.f32 %v1409, 0.0
        %v1418 = vmax.f32 %v1414, 0.0
        %v1419 = vld [vmem:[%s7] sm:$0xff]
        %v1420 = vld [vmem:[%s7 + $0x8] sm:$0xff]
        %v1421 = vld [vmem:[%s7 + $0x10] sm:$0xff]
        %v1422 = vld [vmem:[%s7 + $0x18] sm:$0xff]
        %v1423 = vld [vmem:[%s7 + $0x20] sm:$0xff]
        %v1424 = vld [vmem:[%s7 + $0x28] sm:$0xff]
        %v1425 = vld [vmem:[%s7 + $0x30] sm:$0xff]
        %v1426 = vld [vmem:[%s7 + $0x38] sm:$0xff]
        %v1427 = vld [vmem:[%s9 + $0x6] ss:$0 sm:$0xff]
        %v1429 = vsel %vm1067, %v1417, 0
        %v1432 = vsel %vm1067, %v1418, 0
        %1434 = vmatprep.subr.mxu0 0.0
        %1435 = vmatpush1.msra.mxu0 %v1419
        %1436 = vmatprep.subr.mxu0 0.0
        %1437 = vmatpush1.msra.mxu0 %v1420
        %1438 = vmatprep.subr.mxu0 0.0
        %1439 = vmatpush1.msra.mxu0 %v1421
        %1440 = vmatprep.subr.mxu0 0.0
        %1441 = vmatpush1.msra.mxu0 %v1422
        %1442 = vmatprep.subr.mxu0 0.0
        %1443 = vmatpush1.msra.mxu0 %v1423
        %1444 = vmatprep.subr.mxu0 0.0
        %1445 = vmatpush1.msra.mxu0 %v1424
        %1446 = vmatprep.subr.mxu0 0.0
        %1447 = vmatpush1.msra.mxu0 %v1425
        %1448 = vmatprep.subr.mxu0 0.0
        %1449 = vmatpush1.msra.mxu0 %v1426
        %1450 = vmatprep.subr.mxu0 0.0
        %1451 = vmatpush1.msra.mxu0 0.0
        %1452 = vmatprep.subr.mxu0 0.0
        %1453 = vmatpush1.msra.mxu0 0.0
        %1454 = vmatprep.subr.mxu0 0.0
        %1455 = vmatpush1.msra.mxu0 0.0
        %1456 = vmatprep.subr.mxu0 0.0
        %1457 = vmatpush1.msra.mxu0 0.0
        %1458 = vmatprep.subr.mxu0 0.0
        %1459 = vmatpush1.msra.mxu0 0.0
        %1460 = vmatprep.subr.mxu0 0.0
        %1461 = vmatpush1.msra.mxu0 0.0
        %1462 = vmatprep.subr.mxu0 0.0
        %1463 = vmatpush1.msra.mxu0 0.0
        %1464 = vmatprep.subr.mxu0 0.0
        %1465 = vmatpush1.msra.mxu0 0.0
        %1466 = vmatprep.subr.mxu0 0.0
        %1467 = vmatpush1.msra.mxu0 0.0
        %1468 = vmatprep.subr.mxu0 0.0
        %1469 = vmatpush1.msra.mxu0 0.0
        %1470 = vmatprep.subr.mxu0 0.0
        %1471 = vmatpush1.msra.mxu0 0.0
        %1472 = vmatprep.subr.mxu0 0.0
        %1473 = vmatpush1.msra.mxu0 0.0
        %1474 = vmatprep.subr.mxu0 0.0
        %1475 = vmatpush1.msra.mxu0 0.0
        %1476 = vmatprep.subr.mxu0 0.0
        %1477 = vmatpush1.msra.mxu0 0.0
        %1478 = vmatprep.subr.mxu0 0.0
        %1479 = vmatpush1.msra.mxu0 0.0
        %1480 = vmatprep.subr.mxu0 0.0
        %1481 = vmatpush1.msra.mxu0 0.0
        %1482 = vmatprep.subr.mxu0 0.0
        %1483 = vmatpush1.msra.mxu0 0.0
        %1484 = vmatprep.subr.mxu0 0.0
        %1485 = vmatpush1.msra.mxu0 0.0
        %1486 = vmatprep.subr.mxu0 0.0
        %1487 = vmatpush1.msra.mxu0 0.0
        %1488 = vmatprep.subr.mxu0 0.0
        %1489 = vmatpush1.msra.mxu0 0.0
        %1490 = vmatprep.subr.mxu0 0.0
        %1491 = vmatpush1.msra.mxu0 0.0
        %1492 = vmatprep.subr.mxu0 0.0
        %1493 = vmatpush1.msra.mxu0 0.0
        %1494 = vmatprep.subr.mxu0 0.0
        %1495 = vmatpush1.msra.mxu0 0.0
        %1496 = vmatprep.subr.mxu0 0.0
        %1497 = vmatpush1.msra.mxu0 0.0
        %1498 = vmatprep.mubr.f32.mxu0 0.0
        %1499 = vmatmul.mubr.f32.gmra.mrb[0].mxu0 %v1429
        %v1500 = vpop.f32.mrb[0].mxu0
        %v1501 = vadd.f32 %v1427, %v1500
        %v1502 = vpop.f32.mrb[0].mxu0
        %1503 = vmatprep.mubr.f32.mxu0 0.0
        %1504 = vmatmul.mubr.f32.gmra.mrb[0].mxu0 %v1432
        %v1505 = vpop.f32.mrb[0].mxu0
        %v1506 = vadd.f32 %v1427, %v1505
        %v1507 = vpop.f32.mrb[0].mxu0
        %1508 = vdwg.mxu0
        %v1509 = vmax.f32 %v1501, 0.0
        %v1510 = vmax.f32 %v1506, 0.0
        %v1511 = vld [vmem:[%s8] sm:$0xff]
        %v1512 = vld [vmem:[%s8 + $0x8] sm:$0xff]
        %v1513 = vld [vmem:[%s8 + $0x10] sm:$0xff]
        %v1514 = vld [vmem:[%s8 + $0x18] sm:$0xf]
        %v1515 = vld [vmem:[%s8 + $0x1c] sm:$0xff]
        %v1516 = vld [vmem:[%s8 + $0x24] sm:$0xff]
        %v1517 = vld [vmem:[%s8 + $0x2c] sm:$0xff]
        %v1518 = vld [vmem:[%s8 + $0x34] sm:$0xf]
        %v1519 = vld [vmem:[%s8 + $0x38] sm:$0xff]
        %v1520 = vld [vmem:[%s8 + $0x40] sm:$0xff]
        %v1521 = vld [vmem:[%s8 + $0x48] sm:$0xff]
        %v1522 = vld [vmem:[%s8 + $0x50] sm:$0xf]
        %v1523 = vld [vmem:[%s8 + $0x54] sm:$0xff]
        %v1524 = vld [vmem:[%s8 + $0x5c] sm:$0xff]
        %v1525 = vld [vmem:[%s8 + $0x64] sm:$0xff]
        %v1526 = vld [vmem:[%s8 + $0x6c] sm:$0xf]
        %v1527 = vld [vmem:[%s8 + $0x70] sm:$0xff]
        %v1528 = vld [vmem:[%s8 + $0x78] sm:$0xff]
        %v1529 = vld [vmem:[%s8 + $0x80] sm:$0xff]
        %v1530 = vld [vmem:[%s8 + $0x88] sm:$0xf]
        %v1531 = vld [vmem:[%s8 + $0x8c] sm:$0xff]
        %v1532 = vld [vmem:[%s8 + $0x94] sm:$0xff]
        %v1533 = vld [vmem:[%s8 + $0x9c] sm:$0xff]
        %v1534 = vld [vmem:[%s8 + $0xa4] sm:$0xf]
        %v1535 = vld [vmem:[%s8 + $0xa8] sm:$0xff]
        %v1536 = vld [vmem:[%s8 + $0xb0] sm:$0xff]
        %v1537 = vld [vmem:[%s8 + $0xb8] sm:$0xff]
        %v1538 = vld [vmem:[%s8 + $0xc0] sm:$0xf]
        %v1539 = vld [vmem:[%s8 + $0xc4] sm:$0xff]
        %v1540 = vld [vmem:[%s8 + $0xcc] sm:$0xff]
        %v1541 = vld [vmem:[%s8 + $0xd4] sm:$0xff]
        %v1542 = vld [vmem:[%s8 + $0xdc] sm:$0xf]
        %v1543 = vld [vmem:[%s8 + $0xe0] sm:$0xff]
        %v1544 = vld [vmem:[%s8 + $0xe8] sm:$0xff]
        %v1545 = vld [vmem:[%s8 + $0xf0] sm:$0xff]
        %v1546 = vld [vmem:[%s8 + $0xf8] sm:$0xf]
        %v1547 = vld [vmem:[%s8 + $0xfc] sm:$0xff]
        %v1548 = vld [vmem:[%s8 + $0x104] sm:$0xff]
        %v1549 = vld [vmem:[%s8 + $0x10c] sm:$0xff]
        %v1550 = vld [vmem:[%s8 + $0x114] sm:$0xf]
        %v1551 = vld [vmem:[%s8 + $0x118] sm:$0xff]
        %v1552 = vld [vmem:[%s8 + $0x120] sm:$0xff]
        %v1553 = vld [vmem:[%s8 + $0x128] sm:$0xff]
        %v1554 = vld [vmem:[%s8 + $0x130] sm:$0xf]
        %v1555 = vld [vmem:[%s8 + $0x134] sm:$0xff]
        %v1556 = vld [vmem:[%s8 + $0x13c] sm:$0xff]
        %v1557 = vld [vmem:[%s8 + $0x144] sm:$0xff]
        %v1558 = vld [vmem:[%s8 + $0x14c] sm:$0xf]
        %v1559 = vld [vmem:[%s8 + $0x150] sm:$0xff]
        %v1560 = vld [vmem:[%s8 + $0x158] sm:$0xff]
        %v1561 = vld [vmem:[%s8 + $0x160] sm:$0xff]
        %v1562 = vld [vmem:[%s8 + $0x168] sm:$0xf]
        %v1563 = vld [vmem:[%s8 + $0x16c] sm:$0xff]
        %v1564 = vld [vmem:[%s8 + $0x174] sm:$0xff]
        %v1565 = vld [vmem:[%s8 + $0x17c] sm:$0xff]
        %v1566 = vld [vmem:[%s8 + $0x184] sm:$0xf]
        %v1567 = vld [vmem:[%s8 + $0x188] sm:$0xff]
        %v1568 = vld [vmem:[%s8 + $0x190] sm:$0xff]
        %v1569 = vld [vmem:[%s8 + $0x198] sm:$0xff]
        %v1570 = vld [vmem:[%s8 + $0x1a0] sm:$0xf]
        %v1571 = vld [vmem:[%s8 + $0x1a4] sm:$0xff]
        %v1572 = vld [vmem:[%s8 + $0x1ac] sm:$0xff]
        %v1573 = vld [vmem:[%s8 + $0x1b4] sm:$0xff]
        %v1574 = vld [vmem:[%s8 + $0x1bc] sm:$0xf]
        %v1575 = vpack.c.bf16 %v1510, %v1509
        %s1576 = scalar_lea.vmem %s9, 7
        %v1577 = vld [vmem:[%s1576] ss:$8 sm:$0xf]
        %v1578 = vld [vmem:[%s1576] ss:$8 sm:$0x70]
        %v1579 = vor.u32 %v1577, %v1578
        %v1581 = vlaneseq
        %v1582 = vshrl.u32 %v1581, 7
        %v1583 = vsub.s32 0, %v1582
        %v1584 = vrot.slane %v1579, %v1583
        %v1585 = vlaneseq
        %v1586 = vshrl.u32 %v1585, 7
        %v1587 = vsub.s32 1, %v1586
        %v1588 = vrot.slane %v1579, %v1587
        %v1589 = vlaneseq
        %v1590 = vshrl.u32 %v1589, 7
        %v1591 = vsub.s32 2, %v1590
        %v1592 = vrot.slane %v1579, %v1591
        %v1593 = vlaneseq
        %v1594 = vshrl.u32 %v1593, 7
        %v1595 = vsub.s32 3, %v1594
        %v1596 = vrot.slane %v1579, %v1595
        %v1597 = vlaneseq
        %v1598 = vshrl.u32 %v1597, 7
        %v1599 = vsub.s32 4, %v1598
        %v1600 = vrot.slane %v1579, %v1599
        %v1601 = vlaneseq
        %v1602 = vshrl.u32 %v1601, 7
        %v1603 = vsub.s32 5, %v1602
        %v1604 = vrot.slane %v1579, %v1603
        %v1605 = vlaneseq
        %v1606 = vshrl.u32 %v1605, 7
        %v1607 = vsub.s32 6, %v1606
        %v1608 = vrot.slane %v1579, %v1607
        %v1680 = vunpack.c.l.b16 %v1511
        %v1681 = vunpack.c.h.b16 %v1511
        %v1682 = vunpack.c.l.b16 %v1512
        %v1683 = vunpack.c.h.b16 %v1512
        %v1684 = vunpack.c.l.b16 %v1513
        %v1685 = vunpack.c.h.b16 %v1513
        %v1686 = vunpack.c.l.b16 %v1514
        %v1687 = vunpack.c.l.b16 %v1515
        %v1688 = vunpack.c.h.b16 %v1515
        %v1689 = vunpack.c.l.b16 %v1516
        %v1690 = vunpack.c.h.b16 %v1516
        %v1691 = vunpack.c.l.b16 %v1517
        %v1692 = vunpack.c.h.b16 %v1517
        %v1693 = vunpack.c.l.b16 %v1518
        %v1694 = vunpack.c.l.b16 %v1519
        %v1695 = vunpack.c.h.b16 %v1519
        %v1696 = vunpack.c.l.b16 %v1520
        %v1697 = vunpack.c.h.b16 %v1520
        %v1698 = vunpack.c.l.b16 %v1521
        %v1699 = vunpack.c.h.b16 %v1521
        %v1700 = vunpack.c.l.b16 %v1522
        %v1701 = vunpack.c.l.b16 %v1523
        %v1702 = vunpack.c.h.b16 %v1523
        %v1703 = vunpack.c.l.b16 %v1524
        %v1704 = vunpack.c.h.b16 %v1524
        %v1705 = vunpack.c.l.b16 %v1525
        %v1706 = vunpack.c.h.b16 %v1525
        %v1707 = vunpack.c.l.b16 %v1526
        %v1708 = vunpack.c.l.b16 %v1527
        %v1709 = vunpack.c.h.b16 %v1527
        %v1710 = vunpack.c.l.b16 %v1528
        %v1711 = vunpack.c.h.b16 %v1528
        %v1712 = vunpack.c.l.b16 %v1529
        %v1713 = vunpack.c.h.b16 %v1529
        %v1714 = vunpack.c.l.b16 %v1530
        %v1715 = vunpack.c.l.b16 %v1531
        %v1716 = vunpack.c.h.b16 %v1531
        %v1717 = vunpack.c.l.b16 %v1532
        %v1718 = vunpack.c.h.b16 %v1532
        %v1719 = vunpack.c.l.b16 %v1533
        %v1720 = vunpack.c.h.b16 %v1533
        %v1721 = vunpack.c.l.b16 %v1534
        %v1722 = vunpack.c.l.b16 %v1535
        %v1723 = vunpack.c.h.b16 %v1535
        %v1724 = vunpack.c.l.b16 %v1536
        %v1725 = vunpack.c.h.b16 %v1536
        %v1726 = vunpack.c.l.b16 %v1537
        %v1727 = vunpack.c.h.b16 %v1537
        %v1728 = vunpack.c.l.b16 %v1538
        %v1729 = vunpack.c.l.b16 %v1539
        %v1730 = vunpack.c.h.b16 %v1539
        %v1731 = vunpack.c.l.b16 %v1540
        %v1732 = vunpack.c.h.b16 %v1540
        %v1733 = vunpack.c.l.b16 %v1541
        %v1734 = vunpack.c.h.b16 %v1541
        %v1735 = vunpack.c.l.b16 %v1542
        %v1736 = vunpack.c.l.b16 %v1543
        %v1737 = vunpack.c.h.b16 %v1543
        %v1738 = vunpack.c.l.b16 %v1544
        %v1739 = vunpack.c.h.b16 %v1544
        %v1740 = vunpack.c.l.b16 %v1545
        %v1741 = vunpack.c.h.b16 %v1545
        %v1742 = vunpack.c.l.b16 %v1546
        %v1743 = vunpack.c.l.b16 %v1547
        %v1744 = vunpack.c.h.b16 %v1547
        %v1745 = vunpack.c.l.b16 %v1548
        %v1746 = vunpack.c.h.b16 %v1548
        %v1747 = vunpack.c.l.b16 %v1549
        %v1748 = vunpack.c.h.b16 %v1549
        %v1749 = vunpack.c.l.b16 %v1550
        %v1750 = vunpack.c.l.b16 %v1551
        %v1751 = vunpack.c.h.b16 %v1551
        %v1752 = vunpack.c.l.b16 %v1552
        %v1753 = vunpack.c.h.b16 %v1552
        %v1754 = vunpack.c.l.b16 %v1553
        %v1755 = vunpack.c.h.b16 %v1553
        %v1756 = vunpack.c.l.b16 %v1554
        %v1757 = vunpack.c.l.b16 %v1555
        %v1758 = vunpack.c.h.b16 %v1555
        %v1759 = vunpack.c.l.b16 %v1556
        %v1760 = vunpack.c.h.b16 %v1556
        %v1761 = vunpack.c.l.b16 %v1557
        %v1762 = vunpack.c.h.b16 %v1557
        %v1763 = vunpack.c.l.b16 %v1558
        %v1764 = vunpack.c.l.b16 %v1559
        %v1765 = vunpack.c.h.b16 %v1559
        %v1766 = vunpack.c.l.b16 %v1560
        %v1767 = vunpack.c.h.b16 %v1560
        %v1768 = vunpack.c.l.b16 %v1561
        %v1769 = vunpack.c.h.b16 %v1561
        %v1770 = vunpack.c.l.b16 %v1562
        %v1771 = vunpack.c.l.b16 %v1563
        %v1772 = vunpack.c.h.b16 %v1563
        %v1773 = vunpack.c.l.b16 %v1564
        %v1774 = vunpack.c.h.b16 %v1564
        %v1775 = vunpack.c.l.b16 %v1565
        %v1776 = vunpack.c.h.b16 %v1565
        %v1777 = vunpack.c.l.b16 %v1566
        %v1778 = vunpack.c.l.b16 %v1567
        %v1779 = vunpack.c.h.b16 %v1567
        %v1780 = vunpack.c.l.b16 %v1568
        %v1781 = vunpack.c.h.b16 %v1568
        %v1782 = vunpack.c.l.b16 %v1569
        %v1783 = vunpack.c.h.b16 %v1569
        %v1784 = vunpack.c.l.b16 %v1570
        %v1785 = vunpack.c.l.b16 %v1571
        %v1786 = vunpack.c.h.b16 %v1571
        %v1787 = vunpack.c.l.b16 %v1572
        %v1788 = vunpack.c.h.b16 %v1572
        %v1789 = vunpack.c.l.b16 %v1573
        %v1790 = vunpack.c.h.b16 %v1573
        %v1791 = vunpack.c.l.b16 %v1574
        %v1792 = vpack.c.b16 %v1687, %v1680
        %v1793 = vpack.c.b16 %v1688, %v1681
        %v1794 = vpack.c.b16 %v1689, %v1682
        %v1795 = vpack.c.b16 %v1690, %v1683
        %v1796 = vpack.c.b16 %v1691, %v1684
        %v1797 = vpack.c.b16 %v1692, %v1685
        %v1798 = vpack.c.b16 %v1693, %v1686
        %v1799 = vpack.c.b16 %v1701, %v1694
        %v1800 = vpack.c.b16 %v1702, %v1695
        %v1801 = vpack.c.b16 %v1703, %v1696
        %v1802 = vpack.c.b16 %v1704, %v1697
        %v1803 = vpack.c.b16 %v1705, %v1698
        %v1804 = vpack.c.b16 %v1706, %v1699
        %v1805 = vpack.c.b16 %v1707, %v1700
        %v1806 = vpack.c.b16 %v1715, %v1708
        %v1807 = vpack.c.b16 %v1716, %v1709
        %v1808 = vpack.c.b16 %v1717, %v1710
        %v1809 = vpack.c.b16 %v1718, %v1711
        %v1810 = vpack.c.b16 %v1719, %v1712
        %v1811 = vpack.c.b16 %v1720, %v1713
        %v1812 = vpack.c.b16 %v1721, %v1714
        %v1813 = vpack.c.b16 %v1729, %v1722
        %v1814 = vpack.c.b16 %v1730, %v1723
        %v1815 = vpack.c.b16 %v1731, %v1724
        %v1816 = vpack.c.b16 %v1732, %v1725
        %v1817 = vpack.c.b16 %v1733, %v1726
        %v1818 = vpack.c.b16 %v1734, %v1727
        %v1819 = vpack.c.b16 %v1735, %v1728
        %v1820 = vpack.c.b16 %v1743, %v1736
        %v1821 = vpack.c.b16 %v1744, %v1737
        %v1822 = vpack.c.b16 %v1745, %v1738
        %v1823 = vpack.c.b16 %v1746, %v1739
        %v1824 = vpack.c.b16 %v1747, %v1740
        %v1825 = vpack.c.b16 %v1748, %v1741
        %v1826 = vpack.c.b16 %v1749, %v1742
        %v1827 = vpack.c.b16 %v1757, %v1750
        %v1828 = vpack.c.b16 %v1758, %v1751
        %v1829 = vpack.c.b16 %v1759, %v1752
        %v1830 = vpack.c.b16 %v1760, %v1753
        %v1831 = vpack.c.b16 %v1761, %v1754
        %v1832 = vpack.c.b16 %v1762, %v1755
        %v1833 = vpack.c.b16 %v1763, %v1756
        %v1834 = vpack.c.b16 %v1771, %v1764
        %v1835 = vpack.c.b16 %v1772, %v1765
        %v1836 = vpack.c.b16 %v1773, %v1766
        %v1837 = vpack.c.b16 %v1774, %v1767
        %v1838 = vpack.c.b16 %v1775, %v1768
        %v1839 = vpack.c.b16 %v1776, %v1769
        %v1840 = vpack.c.b16 %v1777, %v1770
        %v1841 = vpack.c.b16 %v1785, %v1778
        %v1842 = vpack.c.b16 %v1786, %v1779
        %v1843 = vpack.c.b16 %v1787, %v1780
        %v1844 = vpack.c.b16 %v1788, %v1781
        %v1845 = vpack.c.b16 %v1789, %v1782
        %v1846 = vpack.c.b16 %v1790, %v1783
        %v1847 = vpack.c.b16 %v1791, %v1784
        %1904 = vmatprep.subr.bf16.mxu0 %v1793
        %1905 = vmatpush1.bf16.msra.mxu0 %v1792
        %1906 = vmatprep.subr.bf16.mxu0 %v1800
        %1907 = vmatpush1.bf16.msra.mxu0 %v1799
        %1908 = vmatprep.subr.bf16.mxu0 %v1807
        %1909 = vmatpush1.bf16.msra.mxu0 %v1806
        %1910 = vmatprep.subr.bf16.mxu0 %v1814
        %1911 = vmatpush1.bf16.msra.mxu0 %v1813
        %1912 = vmatprep.subr.bf16.mxu0 %v1821
        %1913 = vmatpush1.bf16.msra.mxu0 %v1820
        %1914 = vmatprep.subr.bf16.mxu0 %v1828
        %1915 = vmatpush1.bf16.msra.mxu0 %v1827
        %1916 = vmatprep.subr.bf16.mxu0 %v1835
        %1917 = vmatpush1.bf16.msra.mxu0 %v1834
        %1918 = vmatprep.subr.bf16.mxu0 %v1842
        %1919 = vmatpush1.bf16.msra.mxu0 %v1841
        %1920 = vmatprep.subr.bf16.mxu0 0
        %1921 = vmatpush1.bf16.msra.mxu0 0
        %1922 = vmatprep.subr.bf16.mxu0 0
        %1923 = vmatpush1.bf16.msra.mxu0 0
        %1924 = vmatprep.subr.bf16.mxu0 0
        %1925 = vmatpush1.bf16.msra.mxu0 0
        %1926 = vmatprep.subr.bf16.mxu0 0
        %1927 = vmatpush1.bf16.msra.mxu0 0
        %1928 = vmatprep.subr.bf16.mxu0 0
        %1929 = vmatpush1.bf16.msra.mxu0 0
        %1930 = vmatprep.subr.bf16.mxu0 0
        %1931 = vmatpush1.bf16.msra.mxu0 0
        %1932 = vmatprep.subr.bf16.mxu0 0
        %1933 = vmatpush1.bf16.msra.mxu0 0
        %1934 = vmatprep.subr.bf16.mxu0 0
        %1935 = vmatpush1.bf16.msra.mxu0 0
        %1936 = vmatprep.mubr.bf16.mxu0 0
        %1937 = vmatmul.mubr.bf16.gmra.mrb[0].mxu0 %v1575
        %v1938 = vpop.f32.mrb[0].mxu0
        %v1939 = vadd.f32 %v1584, %v1938
        %v1940 = vpop.f32.mrb[0].mxu0
        %v1941 = vadd.f32 %v1588, %v1940
        %v1942 = vpop.f32.mrb[0].mxu0
        %v1943 = vadd.f32 %v1584, %v1942
        %v1944 = vpop.f32.mrb[0].mxu0
        %v1945 = vadd.f32 %v1588, %v1944
        %1946 = vdwg.mxu0
        %1947 = vmatprep.subr.bf16.mxu0 %v1795
        %1948 = vmatpush1.bf16.msra.mxu0 %v1794
        %1949 = vmatprep.subr.bf16.mxu0 %v1802
        %1950 = vmatpush1.bf16.msra.mxu0 %v1801
        %1951 = vmatprep.subr.bf16.mxu0 %v1809
        %1952 = vmatpush1.bf16.msra.mxu0 %v1808
        %1953 = vmatprep.subr.bf16.mxu0 %v1816
        %1954 = vmatpush1.bf16.msra.mxu0 %v1815
        %1955 = vmatprep.subr.bf16.mxu0 %v1823
        %1956 = vmatpush1.bf16.msra.mxu0 %v1822
        %1957 = vmatprep.subr.bf16.mxu0 %v1830
        %1958 = vmatpush1.bf16.msra.mxu0 %v1829
        %1959 = vmatprep.subr.bf16.mxu0 %v1837
        %1960 = vmatpush1.bf16.msra.mxu0 %v1836
        %1961 = vmatprep.subr.bf16.mxu0 %v1844
        %1962 = vmatpush1.bf16.msra.mxu0 %v1843
        %1963 = vmatprep.subr.bf16.mxu0 0
        %1964 = vmatpush1.bf16.msra.mxu0 0
        %1965 = vmatprep.subr.bf16.mxu0 0
        %1966 = vmatpush1.bf16.msra.mxu0 0
        %1967 = vmatprep.subr.bf16.mxu0 0
        %1968 = vmatpush1.bf16.msra.mxu0 0
        %1969 = vmatprep.subr.bf16.mxu0 0
        %1970 = vmatpush1.bf16.msra.mxu0 0
        %1971 = vmatprep.subr.bf16.mxu0 0
        %1972 = vmatpush1.bf16.msra.mxu0 0
        %1973 = vmatprep.subr.bf16.mxu0 0
        %1974 = vmatpush1.bf16.msra.mxu0 0
        %1975 = vmatprep.subr.bf16.mxu0 0
        %1976 = vmatpush1.bf16.msra.mxu0 0
        %1977 = vmatprep.subr.bf16.mxu0 0
        %1978 = vmatpush1.bf16.msra.mxu0 0
        %1979 = vmatprep.mubr.bf16.mxu0 0
        %1980 = vmatmul.mubr.bf16.gmra.mrb[0].mxu0 %v1575
        %v1981 = vpop.f32.mrb[0].mxu0
        %v1982 = vadd.f32 %v1592, %v1981
        %v1983 = vpop.f32.mrb[0].mxu0
        %v1984 = vadd.f32 %v1596, %v1983
        %v1985 = vpop.f32.mrb[0].mxu0
        %v1986 = vadd.f32 %v1592, %v1985
        %v1987 = vpop.f32.mrb[0].mxu0
        %v1988 = vadd.f32 %v1596, %v1987
        %1989 = vdwg.mxu0
        %1990 = vmatprep.subr.bf16.mxu0 %v1797
        %1991 = vmatpush1.bf16.msra.mxu0 %v1796
        %1992 = vmatprep.subr.bf16.mxu0 %v1804
        %1993 = vmatpush1.bf16.msra.mxu0 %v1803
        %1994 = vmatprep.subr.bf16.mxu0 %v1811
        %1995 = vmatpush1.bf16.msra.mxu0 %v1810
        %1996 = vmatprep.subr.bf16.mxu0 %v1818
        %1997 = vmatpush1.bf16.msra.mxu0 %v1817
        %1998 = vmatprep.subr.bf16.mxu0 %v1825
        %1999 = vmatpush1.bf16.msra.mxu0 %v1824
        %2000 = vmatprep.subr.bf16.mxu0 %v1832
        %2001 = vmatpush1.bf16.msra.mxu0 %v1831
        %2002 = vmatprep.subr.bf16.mxu0 %v1839
        %2003 = vmatpush1.bf16.msra.mxu0 %v1838
        %2004 = vmatprep.subr.bf16.mxu0 %v1846
        %2005 = vmatpush1.bf16.msra.mxu0 %v1845
        %2006 = vmatprep.subr.bf16.mxu0 0
        %2007 = vmatpush1.bf16.msra.mxu0 0
        %2008 = vmatprep.subr.bf16.mxu0 0
        %2009 = vmatpush1.bf16.msra.mxu0 0
        %2010 = vmatprep.subr.bf16.mxu0 0
        %2011 = vmatpush1.bf16.msra.mxu0 0
        %2012 = vmatprep.subr.bf16.mxu0 0
        %2013 = vmatpush1.bf16.msra.mxu0 0
        %2014 = vmatprep.subr.bf16.mxu0 0
        %2015 = vmatpush1.bf16.msra.mxu0 0
        %2016 = vmatprep.subr.bf16.mxu0 0
        %2017 = vmatpush1.bf16.msra.mxu0 0
        %2018 = vmatprep.subr.bf16.mxu0 0
        %2019 = vmatpush1.bf16.msra.mxu0 0
        %2020 = vmatprep.subr.bf16.mxu0 0
        %2021 = vmatpush1.bf16.msra.mxu0 0
        %2022 = vmatprep.mubr.bf16.mxu0 0
        %2023 = vmatmul.mubr.bf16.gmra.mrb[0].mxu0 %v1575
        %v2024 = vpop.f32.mrb[0].mxu0
        %v2025 = vadd.f32 %v1600, %v2024
        %v2026 = vpop.f32.mrb[0].mxu0
        %v2027 = vadd.f32 %v1604, %v2026
        %v2028 = vpop.f32.mrb[0].mxu0
        %v2029 = vadd.f32 %v1600, %v2028
        %v2030 = vpop.f32.mrb[0].mxu0
        %v2031 = vadd.f32 %v1604, %v2030
        %2032 = vdwg.mxu0
        %2033 = vmatprep.subr.bf16.mxu0 0
        %2034 = vmatpush1.bf16.msra.mxu0 %v1798
        %2035 = vmatprep.subr.bf16.mxu0 0
        %2036 = vmatpush1.bf16.msra.mxu0 %v1805
        %2037 = vmatprep.subr.bf16.mxu0 0
        %2038 = vmatpush1.bf16.msra.mxu0 %v1812
        %2039 = vmatprep.subr.bf16.mxu0 0
        %2040 = vmatpush1.bf16.msra.mxu0 %v1819
        %2041 = vmatprep.subr.bf16.mxu0 0
        %2042 = vmatpush1.bf16.msra.mxu0 %v1826
        %2043 = vmatprep.subr.bf16.mxu0 0
        %2044 = vmatpush1.bf16.msra.mxu0 %v1833
        %2045 = vmatprep.subr.bf16.mxu0 0
        %2046 = vmatpush1.bf16.msra.mxu0 %v1840
        %2047 = vmatprep.subr.bf16.mxu0 0
        %2048 = vmatpush1.bf16.msra.mxu0 %v1847
        %2049 = vmatprep.subr.bf16.mxu0 0
        %2050 = vmatpush1.bf16.msra.mxu0 0
        %2051 = vmatprep.subr.bf16.mxu0 0
        %2052 = vmatpush1.bf16.msra.mxu0 0
        %2053 = vmatprep.subr.bf16.mxu0 0
        %2054 = vmatpush1.bf16.msra.mxu0 0
        %2055 = vmatprep.subr.bf16.mxu0 0
        %2056 = vmatpush1.bf16.msra.mxu0 0
        %2057 = vmatprep.subr.bf16.mxu0 0
        %2058 = vmatpush1.bf16.msra.mxu0 0
        %2059 = vmatprep.subr.bf16.mxu0 0
        %2060 = vmatpush1.bf16.msra.mxu0 0
        %2061 = vmatprep.subr.bf16.mxu0 0
        %2062 = vmatpush1.bf16.msra.mxu0 0
        %2063 = vmatprep.subr.bf16.mxu0 0
        %2064 = vmatpush1.bf16.msra.mxu0 0
        %2065 = vmatprep.mubr.bf16.mxu0 0
        %2066 = vmatmul.mubr.bf16.gmra.mrb[0].mxu0 %v1575
        %v2067 = vpop.f32.mrb[0].mxu0
        %v2068 = vadd.f32 %v1608, %v2067
        %v2069 = vpop.f32.mrb[0].mxu0
        %v2070 = vpop.f32.mrb[0].mxu0
        %v2071 = vadd.f32 %v1608, %v2070
        %v2072 = vpop.f32.mrb[0].mxu0
        %2073 = vdwg.mxu0
        %v2074 = vxor.u32 %v1939, 2147483648
        %v2075 = vxor.u32 %v1941, 2147483648
        %v2076 = vxor.u32 %v1982, 2147483648
        %v2077 = vxor.u32 %v1984, 2147483648
        %v2078 = vxor.u32 %v2025, 2147483648
        %v2079 = vxor.u32 %v2027, 2147483648
        %v2080 = vxor.u32 %v2068, 2147483648
        %v2081 = vxor.u32 %v1943, 2147483648
        %v2082 = vxor.u32 %v1945, 2147483648
        %v2083 = vxor.u32 %v1986, 2147483648
        %v2084 = vxor.u32 %v1988, 2147483648
        %v2085 = vxor.u32 %v2029, 2147483648
        %v2086 = vxor.u32 %v2031, 2147483648
        %v2087 = vxor.u32 %v2071, 2147483648
        %v2088 = vmul.f32 %v2074, 1.442695
        %v2089 = vpow.pop %v2088
        %v2090 = vmul.f32 %v2075, 1.442695
        %v2091 = vpow.pop %v2090
        %v2092 = vmul.f32 %v2076, 1.442695
        %v2093 = vpow.pop %v2092
        %v2094 = vmul.f32 %v2077, 1.442695
        %v2095 = vpow.pop %v2094
        %v2096 = vmul.f32 %v2078, 1.442695
        %v2097 = vpow.pop %v2096
        %v2098 = vmul.f32 %v2079, 1.442695
        %v2099 = vpow.pop %v2098
        %v2100 = vmul.f32 %v2080, 1.442695
        %v2101 = vpow.pop %v2100
        %v2102 = vmul.f32 %v2081, 1.442695
        %v2103 = vpow.pop %v2102
        %v2104 = vmul.f32 %v2082, 1.442695
        %v2105 = vpow.pop %v2104
        %v2106 = vmul.f32 %v2083, 1.442695
        %v2107 = vpow.pop %v2106
        %v2108 = vmul.f32 %v2084, 1.442695
        %v2109 = vpow.pop %v2108
        %v2110 = vmul.f32 %v2085, 1.442695
        %v2111 = vpow.pop %v2110
        %v2112 = vmul.f32 %v2086, 1.442695
        %v2113 = vpow.pop %v2112
        %v2114 = vmul.f32 %v2087, 1.442695
        %v2115 = vpow.pop %v2114
        %v2116 = vadd.f32 %v2089, 1.0
        %v2117 = vadd.f32 %v2091, 1.0
        %v2118 = vadd.f32 %v2093, 1.0
        %v2119 = vadd.f32 %v2095, 1.0
        %v2120 = vadd.f32 %v2097, 1.0
        %v2121 = vadd.f32 %v2099, 1.0
        %v2122 = vadd.f32 %v2101, 1.0
        %v2123 = vadd.f32 %v2103, 1.0
        %v2124 = vadd.f32 %v2105, 1.0
        %v2125 = vadd.f32 %v2107, 1.0
        %v2126 = vadd.f32 %v2109, 1.0
        %v2127 = vadd.f32 %v2111, 1.0
        %v2128 = vadd.f32 %v2113, 1.0
        %v2129 = vadd.f32 %v2115, 1.0
        %v2130 = vrcp.pop %v2116
        %v2131 = vmul.f32 1.0, %v2130
        %v2132 = vrcp.pop %v2117
        %v2133 = vmul.f32 1.0, %v2132
        %v2134 = vrcp.pop %v2118
        %v2135 = vmul.f32 1.0, %v2134
        %v2136 = vrcp.pop %v2119
        %v2137 = vmul.f32 1.0, %v2136
        %v2138 = vrcp.pop %v2120
        %v2139 = vmul.f32 1.0, %v2138
        %v2140 = vrcp.pop %v2121
        %v2141 = vmul.f32 1.0, %v2140
        %v2142 = vrcp.pop %v2122
        %v2143 = vmul.f32 1.0, %v2142
        %v2144 = vrcp.pop %v2123
        %v2145 = vmul.f32 1.0, %v2144
        %v2146 = vrcp.pop %v2124
        %v2147 = vmul.f32 1.0, %v2146
        %v2148 = vrcp.pop %v2125
        %v2149 = vmul.f32 1.0, %v2148
        %v2150 = vrcp.pop %v2126
        %v2151 = vmul.f32 1.0, %v2150
        %v2152 = vrcp.pop %v2127
        %v2153 = vmul.f32 1.0, %v2152
        %v2154 = vrcp.pop %v2128
        %v2155 = vmul.f32 1.0, %v2154
        %v2156 = vrcp.pop %v2129
        %v2157 = vmul.f32 1.0, %v2156
        %2158 = vst [vmem:[%s355] sm:$0xff] %v2131
        %2159 = vst [vmem:[%s355 + $0x8] sm:$0xff] %v2133
        %2160 = vst [vmem:[%s355 + $0x10] sm:$0xff] %v2135
        %2161 = vst [vmem:[%s355 + $0x18] sm:$0xff] %v2137
        %2162 = vst [vmem:[%s355 + $0x20] sm:$0xff] %v2139
        %2163 = vst [vmem:[%s355 + $0x28] sm:$0xff] %v2141
        %2164 = vst.msk [vmem:[%s355 + $0x30] sm:$0xff] %vm779, %v2143
        %2165 = vst [vmem:[%s355 + $0x38] sm:$0xff] %v2145
        %2166 = vst [vmem:[%s355 + $0x40] sm:$0xff] %v2147
        %2167 = vst [vmem:[%s355 + $0x48] sm:$0xff] %v2149
        %2168 = vst [vmem:[%s355 + $0x50] sm:$0xff] %v2151
        %2169 = vst [vmem:[%s355 + $0x58] sm:$0xff] %v2153
        %2170 = vst [vmem:[%s355 + $0x60] sm:$0xff] %v2155
        %2171 = vst.msk [vmem:[%s355 + $0x68] sm:$0xff] %vm779, %v2157
        %s2172 = sand.u32 %s247, 1
        %s2173 = scalar_lea.sflag [#allocation3], %s2172
        %s2174 = sand.u32 %s247, 1
        %s2175 = smul.addr %s2174, 112
        %s2176 = scalar_lea.vmem [#allocation2], %s2175
        // Predicated region
        $region61: #{autoencoder_forward.1} parent=59 // pred_check
          %p2177 = pneg %p257
        $region62: #{autoencoder_forward.1} parent=59 // pred_check_branch
          %2179 = sbr.rel (%p2177) target = $region64
        $region63: #{autoencoder_forward.1} parent=59 // pred_region
          %s2180 = smul.u32 2, %s24
          %s2182 = ssub.s32 1792, 1792
          %2183 = vsyncadd %s2173, %s2182
          %s2184 = smul.addr %s2180, 7
          %s2185 = smul.addr %s2184, 128
          %s2186 = scalar_lea.hbm %s10, %s2185
          %s2187 = sshll.u32 %s2176, 4
          %s2188 = int_to_ptr.vmem [resolvable:$true] %s2187
          %2193 = dma.vmem_to_hbm [thread:$0]  %s2188, 1792, %s2186, %s2173, 896, 896, 56
        $region64: #{autoencoder_forward.1} parent=59 // pred_fallthru
          _
      $region60: #{autoencoder_forward.1} parent=5 // pred_fallthru
        _
      %p2194 = scmp.le.s32.totalorder 2, %s19
      // Predicated region
      $region65: #{autoencoder_forward.1} parent=5 // pred_check
        %p2195 = pneg %p2194
      $region66: #{autoencoder_forward.1} parent=5 // pred_check_branch
        %2197 = sbr.rel (%p2195) target = $region68
      $region67: #{autoencoder_forward.1} parent=5 // pred_region
        %s2198 = ssub.s32 %s19, 2
        // Predicated region
        $region69: #{autoencoder_forward.1} parent=67 // pred_check
          %p2199 = pneg %p263
        $region70: #{autoencoder_forward.1} parent=67 // pred_check_branch
          %2201 = sbr.rel (%p2199) target = $region72
        $region71: #{autoencoder_forward.1} parent=67 // pred_region
          %s2202 = sand.u32 %s248, 1
          %s2203 = scalar_lea.sflag [#allocation3], %s2202
          %s2204 = sand.u32 %s248, 1
          %s2205 = smul.addr %s2204, 112
          %s2206 = scalar_lea.vmem [#allocation2], %s2205
          %2207 = dma.done %s2203, 1792
        $region72: #{autoencoder_forward.1} parent=67 // pred_fallthru
          _
      $region68: #{autoencoder_forward.1} parent=5 // pred_fallthru
        _
    $region6: #{autoencoder_forward.1} parent=1 // loop_footer
      %s23 = sadd.s32 1, %s19
    $region7: #{autoencoder_forward.1} parent=1 // loop_footer_branch
      %18 = sbr.rel target = $region3
    $region8: #{autoencoder_forward.1} parent=1 // loop_exit
      _
    %2208 = vsyncpa [#allocation3], 1
    %s2209 = scalar_lea.sflag [#allocation3], 1
    %2210 = vsyncpa %s2209, 1

</llo_original>
